<compile_context>
chip_gen: v6e
topology: v6e:2x2x1
jax: 0.10.0
libtpu: 0.0.40
codegen_flags: <defaults>
</compile_context>

<pallas_src>
import functools

import numpy as np
import jax
import jax.numpy as jnp
from jax.experimental import pallas as pl
from jax.experimental.pallas import tpu as pltpu

N = 2            # batch
H = 64           # input height (conv1 kernel (64,1) collapses it to 1)
W = 41           # input width: (41 - 9)//4 + 1 = 9  -> matches fc1 in=64*1*9
C1 = 32          # conv1 out channels
C2 = 64          # conv2 out channels
KW2 = 9          # conv2 kernel width
SW2 = 4          # conv2 stride along W (H is already 1)
WOUT = (W - KW2) // SW2 + 1   # = 9
EPS = 1e-5

# Static im2col column indices (built once at import time, baked into the jit).
_q = np.arange(N * WOUT)
_base = (_q // WOUT) * W + (_q % WOUT) * SW2                 # (N*WOUT,)
IM2COL_IDX = _base[None, :] + np.arange(KW2)[:, None]        # (KW2, N*WOUT)


def cnn_kernel(xg_ref, w1_ref, t1_ref, w2_ref, t2_ref, wfc_ref, bsel_ref,
               bfc_ref, out_ref):
    # conv1 + conv2 fused: for each conv2 tap kw, conv1 on the gathered input
    # columns (bf16 MXU, f32 acc), BN shift + ReLU in f32, then accumulate the
    # conv2 partial product directly in f32 (no concat, no gather matmuls).
    w1 = w1_ref[...]                                          # (C1, H) bf16
    t1 = t1_ref[...]                                          # (C1, 1) f32
    acc = jnp.zeros((C2, N * WOUT), jnp.float32)
    for kw in range(KW2):
        h1 = jnp.dot(w1, xg_ref[kw],
                     preferred_element_type=jnp.float32)      # (C1, N*WOUT)
        h1 = jnp.maximum(h1 + t1, 0.0).astype(jnp.bfloat16)
        acc = acc + jnp.dot(w2_ref[kw], h1,
                            preferred_element_type=jnp.float32)  # (C2, N*WOUT)

    h2 = jnp.maximum(acc + t2_ref[...], 0.0)                  # (C2, N*WOUT) f32

    # fc1: elementwise weight (f32 VPU), then both reductions on the MXU:
    # per-batch segment sum via bsel, channel sum via a ones row vector.
    prod = h2 * wfc_ref[...]                                  # (C2, N*WOUT)
    seg = jnp.dot(prod, bsel_ref[...],
                  preferred_element_type=jnp.float32)         # (C2, N)
    out = jnp.dot(jnp.ones((1, C2), jnp.float32), seg,
                  preferred_element_type=jnp.float32)         # (1, N)
    out_ref[...] = out + bfc_ref[0, 0]


def prepare_params(params):
    """One-time parameter folding: BN scale/shift into weights, fc tiling."""
    (w1, b1, g1, be1, m1, v1,
     w2, b2, g2, be2, m2, v2, wfc, bfc) = params
    f32 = jnp.float32

    s1 = g1 / jnp.sqrt(v1 + EPS)
    t1 = (be1 + s1 * (b1 - m1)).reshape(C1, 1).astype(f32)
    s2 = g2 / jnp.sqrt(v2 + EPS)
    t2 = (be2 + s2 * (b2 - m2)).reshape(C2, 1).astype(f32)

    w1f = (s1[:, None] * w1[:, 0, :, 0]).astype(jnp.bfloat16)            # (C1, H)
    # conv2 weights as per-tap (C2, C1) slabs, kw on the leading axis.
    w2_kw = jnp.transpose(w2[:, :, 0, :], (2, 0, 1))                     # (KW2, C2, C1)
    w2f = (s2[None, :, None] * w2_kw).astype(jnp.bfloat16)               # (KW2, C2, C1)

    # fc1 weight tiled per batch along lanes, and per-batch segment selector.
    wfct = jnp.tile(wfc.reshape(C2, WOUT), (1, N)).astype(f32)           # (C2, N*WOUT)
    bsel = jnp.repeat(jnp.eye(N, dtype=f32), WOUT, axis=0)               # (N*WOUT, N)
    bfc2d = bfc.reshape(1, 1).astype(f32)

    return (w1f, t1, w2f, t2, wfct, bsel, bfc2d)


@jax.jit
def cnn_forward(x_nchw, folded):
    """x_nchw: (N, 1, 64, 41) float32, folded = prepare_params(...) -> (N, 1)."""
    (w1f, t1, w2f, t2, wfct, bsel, bfc2d) = folded

    # Pack both batch elements on the lane axis and pre-gather the KW2 strided
    # conv2 windows of x (gather commutes with conv1 + BN shift + ReLU).
    x = x_nchw[:, 0, :, :].astype(jnp.float32)                # (N, H, W)
    x_all = jnp.transpose(x, (1, 0, 2)).reshape(H, N * W)     # (H, N*W)
    xg = jnp.transpose(x_all[:, IM2COL_IDX], (1, 0, 2))       # (KW2, H, N*WOUT)
    xg = xg.astype(jnp.bfloat16)

    args = (xg, w1f, t1, w2f, t2, wfct, bsel, bfc2d)

    def full_spec(shape):
        nd = len(shape)
        return pl.BlockSpec(shape, lambda i, _nd=nd: (0,) * _nd)

    in_specs = [full_spec(a.shape) for a in args[:-1]]
    in_specs.append(pl.BlockSpec(memory_space=pltpu.MemorySpace.SMEM))   # bfc scalar

    res = pl.pallas_call(
        cnn_kernel,
        out_shape=jax.ShapeDtypeStruct((1, N), jnp.float32),
        grid=(1,),
        in_specs=in_specs,
        out_specs=pl.BlockSpec((1, N), lambda i: (0, 0)),
    )(*args)
    return res.reshape(N, 1)


def reference_forward(x_nchw, params):
    """Pure-JAX reference of the PyTorch forward (eval mode)."""
    (w1, b1, g1, be1, m1, v1,
     w2, b2, g2, be2, m2, v2, wfc, bfc) = params
    hp = jax.lax.Precision.HIGHEST
    dn = ("NCHW", "OIHW", "NCHW")

    def bn(y, g, be, m, v):
        g, be, m, v = (a[None, :, None, None] for a in (g, be, m, v))
        return g * (y - m) / jnp.sqrt(v + EPS) + be

    y = jax.lax.conv_general_dilated(x_nchw, w1, (1, 1), "VALID",
                                     dimension_numbers=dn, precision=hp)
    y = y + b1[None, :, None, None]
    y = jnp.maximum(bn(y, g1, be1, m1, v1), 0.0)
    y = jax.lax.conv_general_dilated(y, w2, (SW2, SW2), "VALID",
                                     dimension_numbers=dn, precision=hp)
    y = y + b2[None, :, None, None]
    y = jnp.maximum(bn(y, g2, be2, m2, v2), 0.0)
    y = y.reshape(-1, C2 * 1 * WOUT)
    return jnp.dot(y, wfc.T, precision=hp) + bfc[None, :]


def make_params(key):
    ks = jax.random.split(key, 14)
    f32 = jnp.float32
    w1 = 0.05 * jax.random.normal(ks[0], (C1, 1, H, 1), f32)
    b1 = 0.05 * jax.random.normal(ks[1], (C1,), f32)
    g1 = 1.0 + 0.1 * jax.random.normal(ks[2], (C1,), f32)
    be1 = 0.1 * jax.random.normal(ks[3], (C1,), f32)
    m1 = 0.1 * jax.random.normal(ks[4], (C1,), f32)
    v1 = 1.0 + 0.1 * jax.random.uniform(ks[5], (C1,), f32)
    w2 = 0.05 * jax.random.normal(ks[6], (C2, C1, 1, KW2), f32)
    b2 = 0.05 * jax.random.normal(ks[7], (C2,), f32)
    g2 = 1.0 + 0.1 * jax.random.normal(ks[8], (C2,), f32)
    be2 = 0.1 * jax.random.normal(ks[9], (C2,), f32)
    m2 = 0.1 * jax.random.normal(ks[10], (C2,), f32)
    v2 = 1.0 + 0.1 * jax.random.uniform(ks[11], (C2,), f32)
    wfc = 0.05 * jax.random.normal(ks[12], (1, C2 * 1 * WOUT), f32)
    bfc = 0.05 * jax.random.normal(ks[13], (1,), f32)
    return (w1, b1, g1, be1, m1, v1, w2, b2, g2, be2, m2, v2, wfc, bfc)


if __name__ == "__main__":
    key = jax.random.PRNGKey(0)
    kx, kp = jax.random.split(key)
    x = jax.random.normal(kx, (N, 1, H, W), jnp.float32)   # NCHW, like PyTorch
    params = make_params(kp)

    # Parameter folding happens once, outside the per-call forward.
    folded = jax.block_until_ready(prepare_params(params))

    out = jax.block_until_ready(cnn_forward(x, folded))
    ref = jax.block_until_ready(reference_forward(x, params))

    assert out.shape == (N, 1), out.shape
    assert jnp.allclose(out, ref, atol=1e-2, rtol=1e-2), (out, ref)
    print("KERNEL_OK")
</pallas_src>

<mosaic_0001>
module attributes {stable_mosaic.version = 11 : i64} {
  func.func @cnn_kernel(%arg0: i32, %arg1: memref<9x64x18xbf16, #tpu.memory_space<vmem>>, %arg2: memref<32x64xbf16, #tpu.memory_space<vmem>>, %arg3: memref<32x1xf32, #tpu.memory_space<vmem>>, %arg4: memref<9x64x32xbf16, #tpu.memory_space<vmem>>, %arg5: memref<64x1xf32, #tpu.memory_space<vmem>>, %arg6: memref<64x18xf32, #tpu.memory_space<vmem>>, %arg7: memref<18x2xf32, #tpu.memory_space<vmem>>, %arg8: memref<1x1xf32, #tpu.memory_space<smem>>, %arg9: memref<1x2xf32, #tpu.memory_space<vmem>>) attributes {dimension_semantics = [#tpu.dimension_semantics<arbitrary>], iteration_bounds = array<i64: 1>, scalar_prefetch = 0 : i64, scratch_operands = 0 : i64, tpu.core_type = #tpu.core_type<tc>, window_params = [{pipeline_mode = #tpu.pipeline_mode<synchronous>, transform_indices = @transform_0, window_bounds = array<i64: 9, 64, 18>}, {pipeline_mode = #tpu.pipeline_mode<synchronous>, transform_indices = @transform_1, window_bounds = array<i64: 32, 64>}, {pipeline_mode = #tpu.pipeline_mode<synchronous>, transform_indices = @transform_2, window_bounds = array<i64: 32, 1>}, {pipeline_mode = #tpu.pipeline_mode<synchronous>, transform_indices = @transform_3, window_bounds = array<i64: 9, 64, 32>}, {pipeline_mode = #tpu.pipeline_mode<synchronous>, transform_indices = @transform_4, window_bounds = array<i64: 64, 1>}, {pipeline_mode = #tpu.pipeline_mode<synchronous>, transform_indices = @transform_5, window_bounds = array<i64: 64, 18>}, {pipeline_mode = #tpu.pipeline_mode<synchronous>, transform_indices = @transform_6, window_bounds = array<i64: 18, 2>}, {transform_indices = @transform_7, window_bounds = array<i64: 1, 1>}, {pipeline_mode = #tpu.pipeline_mode<synchronous>, transform_indices = @transform_8, window_bounds = array<i64: 1, 2>}]} {
    %c0 = arith.constant 0 : index
    %c0_0 = arith.constant 0 : index
    %0 = vector.load %arg2[%c0, %c0_0] : memref<32x64xbf16, #tpu.memory_space<vmem>>, vector<32x64xbf16>
    %c0_1 = arith.constant 0 : index
    %c0_2 = arith.constant 0 : index
    %1 = vector.load %arg3[%c0_1, %c0_2] : memref<32x1xf32, #tpu.memory_space<vmem>>, vector<32x1xf32>
    %cst = arith.constant 0.000000e+00 : f32
    %2 = vector.broadcast %cst : f32 to vector<64x18xf32>
    %c0_3 = arith.constant 0 : index
    %c0_4 = arith.constant 0 : index
    %c0_5 = arith.constant 0 : index
    %3 = vector.load %arg1[%c0_3, %c0_4, %c0_5] : memref<9x64x18xbf16, #tpu.memory_space<vmem>>, vector<1x64x18xbf16>
    %4 = vector.shape_cast %3 : vector<1x64x18xbf16> to vector<64x18xbf16>
    %cst_6 = arith.constant dense<0.000000e+00> : vector<32x18xf32>
    %5 = tpu.matmul %0, %4, %cst_6 {dimension_numbers = #tpu.dot_dimension_numbers<[1], [0], [0], [1], [0, 0, 1, 1], [], []>} : vector<32x64xbf16>, vector<64x18xbf16>, vector<32x18xf32> -> vector<32x18xf32>
    %6 = vector.broadcast %1 : vector<32x1xf32> to vector<32x18xf32>
    %7 = arith.addf %5, %6 : vector<32x18xf32>
    %cst_7 = arith.constant 0.000000e+00 : f32
    %8 = vector.broadcast %cst_7 : f32 to vector<32x18xf32>
    %9 = arith.maximumf %7, %8 : vector<32x18xf32>
    %10 = arith.truncf %9 : vector<32x18xf32> to vector<32x18xbf16>
    %c0_8 = arith.constant 0 : index
    %c0_9 = arith.constant 0 : index
    %c0_10 = arith.constant 0 : index
    %11 = vector.load %arg4[%c0_8, %c0_9, %c0_10] : memref<9x64x32xbf16, #tpu.memory_space<vmem>>, vector<1x64x32xbf16>
    %12 = vector.shape_cast %11 : vector<1x64x32xbf16> to vector<64x32xbf16>
    %cst_11 = arith.constant dense<0.000000e+00> : vector<64x18xf32>
    %13 = tpu.matmul %12, %10, %cst_11 {dimension_numbers = #tpu.dot_dimension_numbers<[1], [0], [0], [1], [0, 0, 1, 1], [], []>} : vector<64x32xbf16>, vector<32x18xbf16>, vector<64x18xf32> -> vector<64x18xf32>
    %14 = arith.addf %2, %13 : vector<64x18xf32>
    %c1 = arith.constant 1 : index
    %c0_12 = arith.constant 0 : index
    %c0_13 = arith.constant 0 : index
    %15 = vector.load %arg1[%c1, %c0_12, %c0_13] : memref<9x64x18xbf16, #tpu.memory_space<vmem>>, vector<1x64x18xbf16>
    %16 = vector.shape_cast %15 : vector<1x64x18xbf16> to vector<64x18xbf16>
    %cst_14 = arith.constant dense<0.000000e+00> : vector<32x18xf32>
    %17 = tpu.matmul %0, %16, %cst_14 {dimension_numbers = #tpu.dot_dimension_numbers<[1], [0], [0], [1], [0, 0, 1, 1], [], []>} : vector<32x64xbf16>, vector<64x18xbf16>, vector<32x18xf32> -> vector<32x18xf32>
    %18 = vector.broadcast %1 : vector<32x1xf32> to vector<32x18xf32>
    %19 = arith.addf %17, %18 : vector<32x18xf32>
    %cst_15 = arith.constant 0.000000e+00 : f32
    %20 = vector.broadcast %cst_15 : f32 to vector<32x18xf32>
    %21 = arith.maximumf %19, %20 : vector<32x18xf32>
    %22 = arith.truncf %21 : vector<32x18xf32> to vector<32x18xbf16>
    %c1_16 = arith.constant 1 : index
    %c0_17 = arith.constant 0 : index
    %c0_18 = arith.constant 0 : index
    %23 = vector.load %arg4[%c1_16, %c0_17, %c0_18] : memref<9x64x32xbf16, #tpu.memory_space<vmem>>, vector<1x64x32xbf16>
    %24 = vector.shape_cast %23 : vector<1x64x32xbf16> to vector<64x32xbf16>
    %cst_19 = arith.constant dense<0.000000e+00> : vector<64x18xf32>
    %25 = tpu.matmul %24, %22, %cst_19 {dimension_numbers = #tpu.dot_dimension_numbers<[1], [0], [0], [1], [0, 0, 1, 1], [], []>} : vector<64x32xbf16>, vector<32x18xbf16>, vector<64x18xf32> -> vector<64x18xf32>
    %26 = arith.addf %14, %25 : vector<64x18xf32>
    %c2 = arith.constant 2 : index
    %c0_20 = arith.constant 0 : index
    %c0_21 = arith.constant 0 : index
    %27 = vector.load %arg1[%c2, %c0_20, %c0_21] : memref<9x64x18xbf16, #tpu.memory_space<vmem>>, vector<1x64x18xbf16>
    %28 = vector.shape_cast %27 : vector<1x64x18xbf16> to vector<64x18xbf16>
    %cst_22 = arith.constant dense<0.000000e+00> : vector<32x18xf32>
    %29 = tpu.matmul %0, %28, %cst_22 {dimension_numbers = #tpu.dot_dimension_numbers<[1], [0], [0], [1], [0, 0, 1, 1], [], []>} : vector<32x64xbf16>, vector<64x18xbf16>, vector<32x18xf32> -> vector<32x18xf32>
    %30 = vector.broadcast %1 : vector<32x1xf32> to vector<32x18xf32>
    %31 = arith.addf %29, %30 : vector<32x18xf32>
    %cst_23 = arith.constant 0.000000e+00 : f32
    %32 = vector.broadcast %cst_23 : f32 to vector<32x18xf32>
    %33 = arith.maximumf %31, %32 : vector<32x18xf32>
    %34 = arith.truncf %33 : vector<32x18xf32> to vector<32x18xbf16>
    %c2_24 = arith.constant 2 : index
    %c0_25 = arith.constant 0 : index
    %c0_26 = arith.constant 0 : index
    %35 = vector.load %arg4[%c2_24, %c0_25, %c0_26] : memref<9x64x32xbf16, #tpu.memory_space<vmem>>, vector<1x64x32xbf16>
    %36 = vector.shape_cast %35 : vector<1x64x32xbf16> to vector<64x32xbf16>
    %cst_27 = arith.constant dense<0.000000e+00> : vector<64x18xf32>
    %37 = tpu.matmul %36, %34, %cst_27 {dimension_numbers = #tpu.dot_dimension_numbers<[1], [0], [0], [1], [0, 0, 1, 1], [], []>} : vector<64x32xbf16>, vector<32x18xbf16>, vector<64x18xf32> -> vector<64x18xf32>
    %38 = arith.addf %26, %37 : vector<64x18xf32>
    %c3 = arith.constant 3 : index
    %c0_28 = arith.constant 0 : index
    %c0_29 = arith.constant 0 : index
    %39 = vector.load %arg1[%c3, %c0_28, %c0_29] : memref<9x64x18xbf16, #tpu.memory_space<vmem>>, vector<1x64x18xbf16>
    %40 = vector.shape_cast %39 : vector<1x64x18xbf16> to vector<64x18xbf16>
    %cst_30 = arith.constant dense<0.000000e+00> : vector<32x18xf32>
    %41 = tpu.matmul %0, %40, %cst_30 {dimension_numbers = #tpu.dot_dimension_numbers<[1], [0], [0], [1], [0, 0, 1, 1], [], []>} : vector<32x64xbf16>, vector<64x18xbf16>, vector<32x18xf32> -> vector<32x18xf32>
    %42 = vector.broadcast %1 : vector<32x1xf32> to vector<32x18xf32>
    %43 = arith.addf %41, %42 : vector<32x18xf32>
    %cst_31 = arith.constant 0.000000e+00 : f32
    %44 = vector.broadcast %cst_31 : f32 to vector<32x18xf32>
    %45 = arith.maximumf %43, %44 : vector<32x18xf32>
    %46 = arith.truncf %45 : vector<32x18xf32> to vector<32x18xbf16>
    %c3_32 = arith.constant 3 : index
    %c0_33 = arith.constant 0 : index
    %c0_34 = arith.constant 0 : index
    %47 = vector.load %arg4[%c3_32, %c0_33, %c0_34] : memref<9x64x32xbf16, #tpu.memory_space<vmem>>, vector<1x64x32xbf16>
    %48 = vector.shape_cast %47 : vector<1x64x32xbf16> to vector<64x32xbf16>
    %cst_35 = arith.constant dense<0.000000e+00> : vector<64x18xf32>
    %49 = tpu.matmul %48, %46, %cst_35 {dimension_numbers = #tpu.dot_dimension_numbers<[1], [0], [0], [1], [0, 0, 1, 1], [], []>} : vector<64x32xbf16>, vector<32x18xbf16>, vector<64x18xf32> -> vector<64x18xf32>
    %50 = arith.addf %38, %49 : vector<64x18xf32>
    %c4 = arith.constant 4 : index
    %c0_36 = arith.constant 0 : index
    %c0_37 = arith.constant 0 : index
    %51 = vector.load %arg1[%c4, %c0_36, %c0_37] : memref<9x64x18xbf16, #tpu.memory_space<vmem>>, vector<1x64x18xbf16>
    %52 = vector.shape_cast %51 : vector<1x64x18xbf16> to vector<64x18xbf16>
    %cst_38 = arith.constant dense<0.000000e+00> : vector<32x18xf32>
    %53 = tpu.matmul %0, %52, %cst_38 {dimension_numbers = #tpu.dot_dimension_numbers<[1], [0], [0], [1], [0, 0, 1, 1], [], []>} : vector<32x64xbf16>, vector<64x18xbf16>, vector<32x18xf32> -> vector<32x18xf32>
    %54 = vector.broadcast %1 : vector<32x1xf32> to vector<32x18xf32>
    %55 = arith.addf %53, %54 : vector<32x18xf32>
    %cst_39 = arith.constant 0.000000e+00 : f32
    %56 = vector.broadcast %cst_39 : f32 to vector<32x18xf32>
    %57 = arith.maximumf %55, %56 : vector<32x18xf32>
    %58 = arith.truncf %57 : vector<32x18xf32> to vector<32x18xbf16>
    %c4_40 = arith.constant 4 : index
    %c0_41 = arith.constant 0 : index
    %c0_42 = arith.constant 0 : index
    %59 = vector.load %arg4[%c4_40, %c0_41, %c0_42] : memref<9x64x32xbf16, #tpu.memory_space<vmem>>, vector<1x64x32xbf16>
    %60 = vector.shape_cast %59 : vector<1x64x32xbf16> to vector<64x32xbf16>
    %cst_43 = arith.constant dense<0.000000e+00> : vector<64x18xf32>
    %61 = tpu.matmul %60, %58, %cst_43 {dimension_numbers = #tpu.dot_dimension_numbers<[1], [0], [0], [1], [0, 0, 1, 1], [], []>} : vector<64x32xbf16>, vector<32x18xbf16>, vector<64x18xf32> -> vector<64x18xf32>
    %62 = arith.addf %50, %61 : vector<64x18xf32>
    %c5 = arith.constant 5 : index
    %c0_44 = arith.constant 0 : index
    %c0_45 = arith.constant 0 : index
    %63 = vector.load %arg1[%c5, %c0_44, %c0_45] : memref<9x64x18xbf16, #tpu.memory_space<vmem>>, vector<1x64x18xbf16>
    %64 = vector.shape_cast %63 : vector<1x64x18xbf16> to vector<64x18xbf16>
    %cst_46 = arith.constant dense<0.000000e+00> : vector<32x18xf32>
    %65 = tpu.matmul %0, %64, %cst_46 {dimension_numbers = #tpu.dot_dimension_numbers<[1], [0], [0], [1], [0, 0, 1, 1], [], []>} : vector<32x64xbf16>, vector<64x18xbf16>, vector<32x18xf32> -> vector<32x18xf32>
    %66 = vector.broadcast %1 : vector<32x1xf32> to vector<32x18xf32>
    %67 = arith.addf %65, %66 : vector<32x18xf32>
    %cst_47 = arith.constant 0.000000e+00 : f32
    %68 = vector.broadcast %cst_47 : f32 to vector<32x18xf32>
    %69 = arith.maximumf %67, %68 : vector<32x18xf32>
    %70 = arith.truncf %69 : vector<32x18xf32> to vector<32x18xbf16>
    %c5_48 = arith.constant 5 : index
    %c0_49 = arith.constant 0 : index
    %c0_50 = arith.constant 0 : index
    %71 = vector.load %arg4[%c5_48, %c0_49, %c0_50] : memref<9x64x32xbf16, #tpu.memory_space<vmem>>, vector<1x64x32xbf16>
    %72 = vector.shape_cast %71 : vector<1x64x32xbf16> to vector<64x32xbf16>
    %cst_51 = arith.constant dense<0.000000e+00> : vector<64x18xf32>
    %73 = tpu.matmul %72, %70, %cst_51 {dimension_numbers = #tpu.dot_dimension_numbers<[1], [0], [0], [1], [0, 0, 1, 1], [], []>} : vector<64x32xbf16>, vector<32x18xbf16>, vector<64x18xf32> -> vector<64x18xf32>
    %74 = arith.addf %62, %73 : vector<64x18xf32>
    %c6 = arith.constant 6 : index
    %c0_52 = arith.constant 0 : index
    %c0_53 = arith.constant 0 : index
    %75 = vector.load %arg1[%c6, %c0_52, %c0_53] : memref<9x64x18xbf16, #tpu.memory_space<vmem>>, vector<1x64x18xbf16>
    %76 = vector.shape_cast %75 : vector<1x64x18xbf16> to vector<64x18xbf16>
    %cst_54 = arith.constant dense<0.000000e+00> : vector<32x18xf32>
    %77 = tpu.matmul %0, %76, %cst_54 {dimension_numbers = #tpu.dot_dimension_numbers<[1], [0], [0], [1], [0, 0, 1, 1], [], []>} : vector<32x64xbf16>, vector<64x18xbf16>, vector<32x18xf32> -> vector<32x18xf32>
    %78 = vector.broadcast %1 : vector<32x1xf32> to vector<32x18xf32>
    %79 = arith.addf %77, %78 : vector<32x18xf32>
    %cst_55 = arith.constant 0.000000e+00 : f32
    %80 = vector.broadcast %cst_55 : f32 to vector<32x18xf32>
    %81 = arith.maximumf %79, %80 : vector<32x18xf32>
    %82 = arith.truncf %81 : vector<32x18xf32> to vector<32x18xbf16>
    %c6_56 = arith.constant 6 : index
    %c0_57 = arith.constant 0 : index
    %c0_58 = arith.constant 0 : index
    %83 = vector.load %arg4[%c6_56, %c0_57, %c0_58] : memref<9x64x32xbf16, #tpu.memory_space<vmem>>, vector<1x64x32xbf16>
    %84 = vector.shape_cast %83 : vector<1x64x32xbf16> to vector<64x32xbf16>
    %cst_59 = arith.constant dense<0.000000e+00> : vector<64x18xf32>
    %85 = tpu.matmul %84, %82, %cst_59 {dimension_numbers = #tpu.dot_dimension_numbers<[1], [0], [0], [1], [0, 0, 1, 1], [], []>} : vector<64x32xbf16>, vector<32x18xbf16>, vector<64x18xf32> -> vector<64x18xf32>
    %86 = arith.addf %74, %85 : vector<64x18xf32>
    %c7 = arith.constant 7 : index
    %c0_60 = arith.constant 0 : index
    %c0_61 = arith.constant 0 : index
    %87 = vector.load %arg1[%c7, %c0_60, %c0_61] : memref<9x64x18xbf16, #tpu.memory_space<vmem>>, vector<1x64x18xbf16>
    %88 = vector.shape_cast %87 : vector<1x64x18xbf16> to vector<64x18xbf16>
    %cst_62 = arith.constant dense<0.000000e+00> : vector<32x18xf32>
    %89 = tpu.matmul %0, %88, %cst_62 {dimension_numbers = #tpu.dot_dimension_numbers<[1], [0], [0], [1], [0, 0, 1, 1], [], []>} : vector<32x64xbf16>, vector<64x18xbf16>, vector<32x18xf32> -> vector<32x18xf32>
    %90 = vector.broadcast %1 : vector<32x1xf32> to vector<32x18xf32>
    %91 = arith.addf %89, %90 : vector<32x18xf32>
    %cst_63 = arith.constant 0.000000e+00 : f32
    %92 = vector.broadcast %cst_63 : f32 to vector<32x18xf32>
    %93 = arith.maximumf %91, %92 : vector<32x18xf32>
    %94 = arith.truncf %93 : vector<32x18xf32> to vector<32x18xbf16>
    %c7_64 = arith.constant 7 : index
    %c0_65 = arith.constant 0 : index
    %c0_66 = arith.constant 0 : index
    %95 = vector.load %arg4[%c7_64, %c0_65, %c0_66] : memref<9x64x32xbf16, #tpu.memory_space<vmem>>, vector<1x64x32xbf16>
    %96 = vector.shape_cast %95 : vector<1x64x32xbf16> to vector<64x32xbf16>
    %cst_67 = arith.constant dense<0.000000e+00> : vector<64x18xf32>
    %97 = tpu.matmul %96, %94, %cst_67 {dimension_numbers = #tpu.dot_dimension_numbers<[1], [0], [0], [1], [0, 0, 1, 1], [], []>} : vector<64x32xbf16>, vector<32x18xbf16>, vector<64x18xf32> -> vector<64x18xf32>
    %98 = arith.addf %86, %97 : vector<64x18xf32>
    %c8 = arith.constant 8 : index
    %c0_68 = arith.constant 0 : index
    %c0_69 = arith.constant 0 : index
    %99 = vector.load %arg1[%c8, %c0_68, %c0_69] : memref<9x64x18xbf16, #tpu.memory_space<vmem>>, vector<1x64x18xbf16>
    %100 = vector.shape_cast %99 : vector<1x64x18xbf16> to vector<64x18xbf16>
    %cst_70 = arith.constant dense<0.000000e+00> : vector<32x18xf32>
    %101 = tpu.matmul %0, %100, %cst_70 {dimension_numbers = #tpu.dot_dimension_numbers<[1], [0], [0], [1], [0, 0, 1, 1], [], []>} : vector<32x64xbf16>, vector<64x18xbf16>, vector<32x18xf32> -> vector<32x18xf32>
    %102 = vector.broadcast %1 : vector<32x1xf32> to vector<32x18xf32>
    %103 = arith.addf %101, %102 : vector<32x18xf32>
    %cst_71 = arith.constant 0.000000e+00 : f32
    %104 = vector.broadcast %cst_71 : f32 to vector<32x18xf32>
    %105 = arith.maximumf %103, %104 : vector<32x18xf32>
    %106 = arith.truncf %105 : vector<32x18xf32> to vector<32x18xbf16>
    %c8_72 = arith.constant 8 : index
    %c0_73 = arith.constant 0 : index
    %c0_74 = arith.constant 0 : index
    %107 = vector.load %arg4[%c8_72, %c0_73, %c0_74] : memref<9x64x32xbf16, #tpu.memory_space<vmem>>, vector<1x64x32xbf16>
    %108 = vector.shape_cast %107 : vector<1x64x32xbf16> to vector<64x32xbf16>
    %cst_75 = arith.constant dense<0.000000e+00> : vector<64x18xf32>
    %109 = tpu.matmul %108, %106, %cst_75 {dimension_numbers = #tpu.dot_dimension_numbers<[1], [0], [0], [1], [0, 0, 1, 1], [], []>} : vector<64x32xbf16>, vector<32x18xbf16>, vector<64x18xf32> -> vector<64x18xf32>
    %110 = arith.addf %98, %109 : vector<64x18xf32>
    %c0_76 = arith.constant 0 : index
    %c0_77 = arith.constant 0 : index
    %111 = vector.load %arg5[%c0_76, %c0_77] : memref<64x1xf32, #tpu.memory_space<vmem>>, vector<64x1xf32>
    %112 = vector.broadcast %111 : vector<64x1xf32> to vector<64x18xf32>
    %113 = arith.addf %110, %112 : vector<64x18xf32>
    %cst_78 = arith.constant 0.000000e+00 : f32
    %114 = vector.broadcast %cst_78 : f32 to vector<64x18xf32>
    %115 = arith.maximumf %113, %114 : vector<64x18xf32>
    %c0_79 = arith.constant 0 : index
    %c0_80 = arith.constant 0 : index
    %116 = vector.load %arg6[%c0_79, %c0_80] : memref<64x18xf32, #tpu.memory_space<vmem>>, vector<64x18xf32>
    %117 = arith.mulf %115, %116 : vector<64x18xf32>
    %c0_81 = arith.constant 0 : index
    %c0_82 = arith.constant 0 : index
    %118 = vector.load %arg7[%c0_81, %c0_82] : memref<18x2xf32, #tpu.memory_space<vmem>>, vector<18x2xf32>
    %cst_83 = arith.constant dense<0.000000e+00> : vector<64x2xf32>
    %119 = tpu.matmul %117, %118, %cst_83 {dimension_numbers = #tpu.dot_dimension_numbers<[1], [0], [0], [1], [0, 0, 1, 1], [], []>} : vector<64x18xf32>, vector<18x2xf32>, vector<64x2xf32> -> vector<64x2xf32>
    %cst_84 = arith.constant 1.000000e+00 : f32
    %120 = vector.broadcast %cst_84 : f32 to vector<1x64xf32>
    %cst_85 = arith.constant dense<0.000000e+00> : vector<1x2xf32>
    %121 = tpu.matmul %120, %119, %cst_85 {dimension_numbers = #tpu.dot_dimension_numbers<[1], [0], [0], [1], [0, 0, 1, 1], [], []>} : vector<1x64xf32>, vector<64x2xf32>, vector<1x2xf32> -> vector<1x2xf32>
    %c0_86 = arith.constant 0 : index
    %c0_87 = arith.constant 0 : index
    %122 = memref.load %arg8[%c0_86, %c0_87] : memref<1x1xf32, #tpu.memory_space<smem>>
    %123 = vector.broadcast %122 : f32 to vector<1x2xf32>
    %124 = arith.addf %121, %123 : vector<1x2xf32>
    %c0_88 = arith.constant 0 : index
    %c0_89 = arith.constant 0 : index
    %125 = vector.load %arg9[%c0_88, %c0_89] : memref<1x2xf32, #tpu.memory_space<vmem>>, vector<1x2xf32>
    tpu.vector_store %arg9[%c0_88, %c0_89], %124 {strides = array<i32>} : memref<1x2xf32, #tpu.memory_space<vmem>>, vector<1x2xf32>,
    return
  }
  func.func @transform_0(%arg0: i32) -> (i32, i32, i32) {
    %c0_i32 = arith.constant 0 : i32
    %c0_i32_0 = arith.constant 0 : i32
    %c0_i32_1 = arith.constant 0 : i32
    %c0_i32_2 = arith.constant 0 : i32
    return %c0_i32, %c0_i32_0, %c0_i32_1 : i32, i32, i32
  }
  func.func @transform_1(%arg0: i32) -> (i32, i32) {
    %c0_i32 = arith.constant 0 : i32
    %c0_i32_0 = arith.constant 0 : i32
    %c0_i32_1 = arith.constant 0 : i32
    return %c0_i32, %c0_i32_0 : i32, i32
  }
  func.func @transform_2(%arg0: i32) -> (i32, i32) {
    %c0_i32 = arith.constant 0 : i32
    %c0_i32_0 = arith.constant 0 : i32
    %c0_i32_1 = arith.constant 0 : i32
    return %c0_i32, %c0_i32_0 : i32, i32
  }
  func.func @transform_3(%arg0: i32) -> (i32, i32, i32) {
    %c0_i32 = arith.constant 0 : i32
    %c0_i32_0 = arith.constant 0 : i32
    %c0_i32_1 = arith.constant 0 : i32
    %c0_i32_2 = arith.constant 0 : i32
    return %c0_i32, %c0_i32_0, %c0_i32_1 : i32, i32, i32
  }
  func.func @transform_4(%arg0: i32) -> (i32, i32) {
    %c0_i32 = arith.constant 0 : i32
    %c0_i32_0 = arith.constant 0 : i32
    %c0_i32_1 = arith.constant 0 : i32
    return %c0_i32, %c0_i32_0 : i32, i32
  }
  func.func @transform_5(%arg0: i32) -> (i32, i32) {
    %c0_i32 = arith.constant 0 : i32
    %c0_i32_0 = arith.constant 0 : i32
    %c0_i32_1 = arith.constant 0 : i32
    return %c0_i32, %c0_i32_0 : i32, i32
  }
  func.func @transform_6(%arg0: i32) -> (i32, i32) {
    %c0_i32 = arith.constant 0 : i32
    %c0_i32_0 = arith.constant 0 : i32
    %c0_i32_1 = arith.constant 0 : i32
    return %c0_i32, %c0_i32_0 : i32, i32
  }
  func.func @transform_7(%arg0: i32) -> (i32, i32) {
    %c0_i32 = arith.constant 0 : i32
    %c0_i32_0 = arith.constant 0 : i32
    %c0_i32_1 = arith.constant 0 : i32
    return %c0_i32, %c0_i32_0 : i32, i32
  }
  func.func @transform_8(%arg0: i32) -> (i32, i32) {
    %c0_i32 = arith.constant 0 : i32
    %c0_i32_0 = arith.constant 0 : i32
    %c0_i32_1 = arith.constant 0 : i32
    return %c0_i32, %c0_i32_0 : i32, i32
  }
}

</mosaic_0001>

<llo_original>
// kernel: cnn_forward.1
$region0: #{cnn_forward.1}
  #allocation0 [shape = 'u32[]', space=smem, size = 0x4, offset = 0x4, fixed_abs, tag = 'smem constant byte address 0x4 - core index']
  #allocation1 [shape = 'u32[144,128]{1,0:T(1,128)}', space=vmem, size = 0x12000, scoped, tag = 'internal scratch']
  #allocation2 [shape = 'f32[1,1]{1,0:T(1,128)S(6)}', space=smem, size = 0x200, scoped, tag = 'scoped memory for cnn_forward.1']
  %s0 = inlined_call_operand.vmem [shape: bf16[9,64,18], index: 0, kind: input, shape index: {}]
  %s1 = inlined_call_operand.vmem [shape: bf16[32,64], index: 1, kind: input, shape index: {}]
  %s2 = inlined_call_operand.vmem [shape: f32[32,1], index: 2, kind: input, shape index: {}]
  %s3 = inlined_call_operand.vmem [shape: bf16[9,64,32], index: 3, kind: input, shape index: {}]
  %s4 = inlined_call_operand.vmem [shape: f32[64,1], index: 4, kind: input, shape index: {}]
  %s5 = inlined_call_operand.vmem [shape: f32[64,18], index: 5, kind: input, shape index: {}]
  %s6 = inlined_call_operand.vmem [shape: f32[18,2], index: 6, kind: input, shape index: {}]
  %s7 = inlined_call_operand.<no memory space> [shape: f32[1,1], index: 7, kind: input, shape index: {}]
  %s8 = inlined_call_operand.hbm [shape: f32[1,2], index: 8, kind: output, shape index: {}]
  %s9 = sld [smem:[#allocation0]]
  $region42: #{cnn_forward.1} parent=0
    _
  %s11 = ssub.s32 1, %s9
  %s12 = scalar_select 0, %s11, %s9
  %13 = sst [smem:[#allocation2]] %s7
  $region1: #{cnn_forward.1} parent=0
    #allocation3 [shape = 'u8[512]{0}', space=vmem, size = 0x400, scoped, tag = 'output window, operand 0, single buffered']
    #allocation4 [shape = 's32[1]{0}', space=sflag, size = 0x4, scoped, tag = 'scoped memory for cnn_forward.1']
    %14 = vsyncpa [#allocation4], 0
    // Predicated region
    $region2: #{cnn_forward.1} parent=1 // pred_check
      _
    $region3: #{cnn_forward.1} parent=1 // pred_check_branch
      %16 = sbr.rel (0) target = $region5
    $region4: #{cnn_forward.1} parent=1 // pred_region
      _
    $region5: #{cnn_forward.1} parent=1 // pred_fallthru
      _
    // Predicated region
    $region6: #{cnn_forward.1} parent=1 // pred_check
      _
    $region7: #{cnn_forward.1} parent=1 // pred_check_branch
      %18 = sbr.rel (0) target = $region9
    $region8: #{cnn_forward.1} parent=1 // pred_region
      _
    $region9: #{cnn_forward.1} parent=1 // pred_fallthru
      _
    // Predicated region
    $region10: #{cnn_forward.1} parent=1 // pred_check
      _
    $region11: #{cnn_forward.1} parent=1 // pred_check_branch
      %20 = sbr.rel (0) target = $region13
    $region12: #{cnn_forward.1} parent=1 // pred_region
      _
    $region13: #{cnn_forward.1} parent=1 // pred_fallthru
      _
    // Predicated region
    $region14: #{cnn_forward.1} parent=1 // pred_check
      _
    $region15: #{cnn_forward.1} parent=1 // pred_check_branch
      %22 = sbr.rel (0) target = $region17
    $region16: #{cnn_forward.1} parent=1 // pred_region
      _
    $region17: #{cnn_forward.1} parent=1 // pred_fallthru
      _
    // Predicated region
    $region18: #{cnn_forward.1} parent=1 // pred_check
      _
    $region19: #{cnn_forward.1} parent=1 // pred_check_branch
      %24 = sbr.rel (0) target = $region21
    $region20: #{cnn_forward.1} parent=1 // pred_region
      _
    $region21: #{cnn_forward.1} parent=1 // pred_fallthru
      _
    // Predicated region
    $region22: #{cnn_forward.1} parent=1 // pred_check
      _
    $region23: #{cnn_forward.1} parent=1 // pred_check_branch
      %26 = sbr.rel (0) target = $region25
    $region24: #{cnn_forward.1} parent=1 // pred_region
      _
    $region25: #{cnn_forward.1} parent=1 // pred_fallthru
      _
    // Predicated region
    $region26: #{cnn_forward.1} parent=1 // pred_check
      _
    $region27: #{cnn_forward.1} parent=1 // pred_check_branch
      %28 = sbr.rel (0) target = $region29
    $region28: #{cnn_forward.1} parent=1 // pred_region
      _
    $region29: #{cnn_forward.1} parent=1 // pred_fallthru
      _
    // Predicated region
    $region30: #{cnn_forward.1} parent=1 // pred_check
      _
    $region31: #{cnn_forward.1} parent=1 // pred_check_branch
      %30 = sbr.rel (0) target = $region33
    $region32: #{cnn_forward.1} parent=1 // pred_region
      _
    $region33: #{cnn_forward.1} parent=1 // pred_fallthru
      _
    %v32 = vld [vmem:[%s1] sm:$0xf]
    %v33 = vld [vmem:[%s1 + $0x4] sm:$0xf]
    %v34 = vld [vmem:[%s1 + $0x8] sm:$0xf]
    %v35 = vld [vmem:[%s1 + $0xc] sm:$0xf]
    %v36 = vld [vmem:[%s2] sm:$0xff]
    %v37 = vld [vmem:[%s2 + $0x8] sm:$0xff]
    %v38 = vld [vmem:[%s2 + $0x10] sm:$0xff]
    %v39 = vld [vmem:[%s2 + $0x18] sm:$0xff]
    %v40 = vld [vmem:[%s0] sm:$0xf]
    %v41 = vld [vmem:[%s0 + $0x4] sm:$0xf]
    %v42 = vld [vmem:[%s0 + $0x8] sm:$0xf]
    %v43 = vld [vmem:[%s0 + $0xc] sm:$0xf]
    %v44 = vld [vmem:[%s0 + $0x10] sm:$0xf]
    %v45 = vld [vmem:[%s0 + $0x14] sm:$0xf]
    %v46 = vld [vmem:[%s0 + $0x18] sm:$0xf]
    %v47 = vld [vmem:[%s0 + $0x1c] sm:$0xf]
    %49 = vset.pattern.permute.xlu0 0
    %50 = vperm.xlu0 %49, %v36
    %v51 = vpop.permute.xlu0 %50
    %54 = vset.pattern.permute.xlu0 0
    %55 = vperm.xlu0 %54, %v37
    %v56 = vpop.permute.xlu0 %55
    %59 = vset.pattern.permute.xlu0 0
    %60 = vperm.xlu0 %59, %v38
    %v61 = vpop.permute.xlu0 %60
    %64 = vset.pattern.permute.xlu0 0
    %65 = vperm.xlu0 %64, %v39
    %v66 = vpop.permute.xlu0 %65
    %v72 = vunpack.c.l.b16 %v32
    %v73 = vunpack.c.l.b16 %v33
    %v74 = vunpack.c.l.b16 %v34
    %v75 = vunpack.c.l.b16 %v35
    %v76 = vpack.c.b16 %v73, %v72
    %v77 = vpack.c.b16 %v75, %v74
    %v86 = vunpack.c.l.b16 %v40
    %v87 = vunpack.c.l.b16 %v41
    %v88 = vunpack.c.l.b16 %v42
    %v89 = vunpack.c.l.b16 %v43
    %v90 = vunpack.c.l.b16 %v44
    %v91 = vunpack.c.l.b16 %v45
    %v92 = vunpack.c.l.b16 %v46
    %v93 = vunpack.c.l.b16 %v47
    %v94 = vpack.c.b16 %v87, %v86
    %v95 = vpack.c.b16 %v89, %v88
    %v96 = vpack.c.b16 %v91, %v90
    %v97 = vpack.c.b16 %v93, %v92
    %vm102 = vcmask 523264
    %v104 = vsel %vm102, %v76, 0
    %v107 = vsel %vm102, %v77, 0
    %109 = vmatprep.subr.bf16.mxu0 0
    %110 = vmatpush1.bf16.msra.mxu0 0
    %111 = vmatprep.subr.bf16.mxu0 0
    %112 = vmatpush1.bf16.msra.mxu0 0
    %113 = vmatprep.subr.bf16.mxu0 0
    %114 = vmatpush1.bf16.msra.mxu0 0
    %115 = vmatprep.subr.bf16.mxu0 0
    %116 = vmatpush1.bf16.msra.mxu0 0
    %117 = vmatprep.subr.bf16.mxu0 0
    %118 = vmatpush1.bf16.msra.mxu0 %v97
    %119 = vmatprep.subr.bf16.mxu0 0
    %120 = vmatpush1.bf16.msra.mxu0 %v96
    %121 = vmatprep.subr.bf16.mxu0 0
    %122 = vmatpush1.bf16.msra.mxu0 %v95
    %123 = vmatprep.subr.bf16.mxu0 0
    %124 = vmatpush1.bf16.msra.mxu0 %v94
    %125 = vmatprep.subr.bf16.mxu0 0
    %126 = vmatpush2.bf16.msra.mxu0 0
    %127 = vmatprep.subr.bf16.mxu0 0
    %128 = vmatpush2.bf16.msra.mxu0 0
    %129 = vmatprep.subr.bf16.mxu0 0
    %130 = vmatpush2.bf16.msra.mxu0 0
    %131 = vmatprep.subr.bf16.mxu0 0
    %132 = vmatpush2.bf16.msra.mxu0 0
    %133 = vmatprep.subr.bf16.mxu0 0
    %134 = vmatpush2.bf16.msra.mxu0 0
    %135 = vmatprep.subr.bf16.mxu0 0
    %136 = vmatpush2.bf16.msra.mxu0 0
    %137 = vmatprep.subr.bf16.mxu0 0
    %138 = vmatpush2.bf16.msra.mxu0 0
    %139 = vmatprep.subr.bf16.mxu0 0
    %140 = vmatpush2.bf16.msra.mxu0 0
    %141 = vmatprep.mubr.bf16.mxu0 0
    %142 = vmatmul.mubr.bf16.gmra.mxu0 %v104
    %v143 = vpop.f32.mrf.mxu0
    %v144 = vadd.f32 %v51, %v143
    %v145 = vpop.f32.mrf.mxu0
    %v146 = vpop.f32.mrf.mxu0
    %v147 = vadd.f32 %v56, %v146
    %v148 = vpop.f32.mrf.mxu0
    %149 = vmatprep.mubr.bf16.mxu0 0
    %150 = vmatmul.mubr.bf16.gmra.mxu0 %v107
    %v151 = vpop.f32.mrf.mxu0
    %v152 = vadd.f32 %v61, %v151
    %v153 = vpop.f32.mrf.mxu0
    %v154 = vpop.f32.mrf.mxu0
    %v155 = vadd.f32 %v66, %v154
    %v156 = vpop.f32.mrf.mxu0
    %157 = vdwg.mxu0
    %v158 = vmax.f32 %v144, 0.0
    %v159 = vmax.f32 %v147, 0.0
    %v160 = vmax.f32 %v152, 0.0
    %v161 = vmax.f32 %v155, 0.0
    %v162 = vpack.c.bf16 %v159, %v158
    %v163 = vpack.c.bf16 %v161, %v160
    %v164 = vld [vmem:[%s3] sm:$0xf]
    %v165 = vld [vmem:[%s3 + $0x4] sm:$0xf]
    %v166 = vld [vmem:[%s3 + $0x8] sm:$0xf]
    %v167 = vld [vmem:[%s3 + $0xc] sm:$0xf]
    %v168 = vld [vmem:[%s3 + $0x10] sm:$0xf]
    %v169 = vld [vmem:[%s3 + $0x14] sm:$0xf]
    %v170 = vld [vmem:[%s3 + $0x18] sm:$0xf]
    %v171 = vld [vmem:[%s3 + $0x1c] sm:$0xf]
    %s172 = scalar_lea.vmem %s0, 32
    %v173 = vld [vmem:[%s172] sm:$0xf]
    %v174 = vld [vmem:[%s172 + $0x4] sm:$0xf]
    %v175 = vld [vmem:[%s172 + $0x8] sm:$0xf]
    %v176 = vld [vmem:[%s172 + $0xc] sm:$0xf]
    %v177 = vld [vmem:[%s172 + $0x10] sm:$0xf]
    %v178 = vld [vmem:[%s172 + $0x14] sm:$0xf]
    %v179 = vld [vmem:[%s172 + $0x18] sm:$0xf]
    %v180 = vld [vmem:[%s172 + $0x1c] sm:$0xf]
    %v189 = vunpack.c.l.b16 %v173
    %v190 = vunpack.c.l.b16 %v174
    %v191 = vunpack.c.l.b16 %v175
    %v192 = vunpack.c.l.b16 %v176
    %v193 = vunpack.c.l.b16 %v177
    %v194 = vunpack.c.l.b16 %v178
    %v195 = vunpack.c.l.b16 %v179
    %v196 = vunpack.c.l.b16 %v180
    %v197 = vpack.c.b16 %v190, %v189
    %v198 = vpack.c.b16 %v192, %v191
    %v199 = vpack.c.b16 %v194, %v193
    %v200 = vpack.c.b16 %v196, %v195
    %205 = vmatprep.subr.bf16.mxu0 0
    %206 = vmatpush1.bf16.msra.mxu0 0
    %207 = vmatprep.subr.bf16.mxu0 0
    %208 = vmatpush1.bf16.msra.mxu0 0
    %209 = vmatprep.subr.bf16.mxu0 0
    %210 = vmatpush1.bf16.msra.mxu0 0
    %211 = vmatprep.subr.bf16.mxu0 0
    %212 = vmatpush1.bf16.msra.mxu0 0
    %213 = vmatprep.subr.bf16.mxu0 0
    %214 = vmatpush1.bf16.msra.mxu0 %v200
    %215 = vmatprep.subr.bf16.mxu0 0
    %216 = vmatpush1.bf16.msra.mxu0 %v199
    %217 = vmatprep.subr.bf16.mxu0 0
    %218 = vmatpush1.bf16.msra.mxu0 %v198
    %219 = vmatprep.subr.bf16.mxu0 0
    %220 = vmatpush1.bf16.msra.mxu0 %v197
    %221 = vmatprep.subr.bf16.mxu0 0
    %222 = vmatpush2.bf16.msra.mxu0 0
    %223 = vmatprep.subr.bf16.mxu0 0
    %224 = vmatpush2.bf16.msra.mxu0 0
    %225 = vmatprep.subr.bf16.mxu0 0
    %226 = vmatpush2.bf16.msra.mxu0 0
    %227 = vmatprep.subr.bf16.mxu0 0
    %228 = vmatpush2.bf16.msra.mxu0 0
    %229 = vmatprep.subr.bf16.mxu0 0
    %230 = vmatpush2.bf16.msra.mxu0 0
    %231 = vmatprep.subr.bf16.mxu0 0
    %232 = vmatpush2.bf16.msra.mxu0 0
    %233 = vmatprep.subr.bf16.mxu0 0
    %234 = vmatpush2.bf16.msra.mxu0 0
    %235 = vmatprep.subr.bf16.mxu0 0
    %236 = vmatpush2.bf16.msra.mxu0 0
    %237 = vmatprep.mubr.bf16.mxu0 0
    %238 = vmatmul.mubr.bf16.gmra.mxu0 %v104
    %v239 = vpop.f32.mrf.mxu0
    %v240 = vadd.f32 %v51, %v239
    %v241 = vpop.f32.mrf.mxu0
    %v242 = vpop.f32.mrf.mxu0
    %v243 = vadd.f32 %v56, %v242
    %v244 = vpop.f32.mrf.mxu0
    %245 = vmatprep.mubr.bf16.mxu0 0
    %246 = vmatmul.mubr.bf16.gmra.mxu0 %v107
    %v247 = vpop.f32.mrf.mxu0
    %v248 = vadd.f32 %v61, %v247
    %v249 = vpop.f32.mrf.mxu0
    %v250 = vpop.f32.mrf.mxu0
    %v251 = vadd.f32 %v66, %v250
    %v252 = vpop.f32.mrf.mxu0
    %253 = vdwg.mxu0
    %v254 = vmax.f32 %v240, 0.0
    %v255 = vmax.f32 %v243, 0.0
    %v256 = vmax.f32 %v248, 0.0
    %v257 = vmax.f32 %v251, 0.0
    %v258 = vpack.c.bf16 %v255, %v254
    %v259 = vpack.c.bf16 %v257, %v256
    %s260 = scalar_lea.vmem %s3, 32
    %v261 = vld [vmem:[%s260] sm:$0xf]
    %v262 = vld [vmem:[%s260 + $0x4] sm:$0xf]
    %v263 = vld [vmem:[%s260 + $0x8] sm:$0xf]
    %v264 = vld [vmem:[%s260 + $0xc] sm:$0xf]
    %v265 = vld [vmem:[%s260 + $0x10] sm:$0xf]
    %v266 = vld [vmem:[%s260 + $0x14] sm:$0xf]
    %v267 = vld [vmem:[%s260 + $0x18] sm:$0xf]
    %v268 = vld [vmem:[%s260 + $0x1c] sm:$0xf]
    %v277 = vunpack.c.l.b16 %v261
    %v278 = vunpack.c.l.b16 %v262
    %v279 = vunpack.c.l.b16 %v263
    %v280 = vunpack.c.l.b16 %v264
    %v281 = vunpack.c.l.b16 %v265
    %v282 = vunpack.c.l.b16 %v266
    %v283 = vunpack.c.l.b16 %v267
    %v284 = vunpack.c.l.b16 %v268
    %v285 = vpack.c.b16 %v278, %v277
    %v286 = vpack.c.b16 %v280, %v279
    %v287 = vpack.c.b16 %v282, %v281
    %v288 = vpack.c.b16 %v284, %v283
    %vm289 = vcmask 261120
    %v291 = vsel %vm289, %v285, 0
    %v294 = vsel %vm289, %v286, 0
    %v297 = vsel %vm289, %v287, 0
    %v300 = vsel %vm289, %v288, 0
    %302 = vmatprep.subr.bf16.mxu0 0
    %303 = vmatpush1.bf16.msra.mxu0 0
    %304 = vmatprep.subr.bf16.mxu0 0
    %305 = vmatpush1.bf16.msra.mxu0 0
    %306 = vmatprep.subr.bf16.mxu0 0
    %307 = vmatpush1.bf16.msra.mxu0 0
    %308 = vmatprep.subr.bf16.mxu0 0
    %309 = vmatpush1.bf16.msra.mxu0 0
    %310 = vmatprep.subr.bf16.mxu0 0
    %311 = vmatpush1.bf16.msra.mxu0 0
    %312 = vmatprep.subr.bf16.mxu0 0
    %313 = vmatpush1.bf16.msra.mxu0 0
    %314 = vmatprep.subr.bf16.mxu0 0
    %315 = vmatpush1.bf16.msra.mxu0 %v259
    %316 = vmatprep.subr.bf16.mxu0 0
    %317 = vmatpush1.bf16.msra.mxu0 %v258
    %318 = vmatprep.subr.bf16.mxu0 0
    %319 = vmatpush2.bf16.msra.mxu0 0
    %320 = vmatprep.subr.bf16.mxu0 0
    %321 = vmatpush2.bf16.msra.mxu0 0
    %322 = vmatprep.subr.bf16.mxu0 0
    %323 = vmatpush2.bf16.msra.mxu0 0
    %324 = vmatprep.subr.bf16.mxu0 0
    %325 = vmatpush2.bf16.msra.mxu0 0
    %326 = vmatprep.subr.bf16.mxu0 0
    %327 = vmatpush2.bf16.msra.mxu0 0
    %328 = vmatprep.subr.bf16.mxu0 0
    %329 = vmatpush2.bf16.msra.mxu0 0
    %330 = vmatprep.subr.bf16.mxu0 0
    %331 = vmatpush2.bf16.msra.mxu0 0
    %332 = vmatprep.subr.bf16.mxu0 0
    %333 = vmatpush2.bf16.msra.mxu0 0
    %334 = vmatprep.mubr.bf16.mxu0 0
    %335 = vmatmul.mubr.bf16.gmra.mxu0 %v291
    %v336 = vpop.f32.mrf.mxu0
    %v337 = vadd.f32 0.0, %v336
    %v338 = vpop.f32.mrf.mxu0
    %v339 = vpop.f32.mrf.mxu0
    %v340 = vadd.f32 0.0, %v339
    %v341 = vpop.f32.mrf.mxu0
    %342 = vmatprep.mubr.bf16.mxu0 0
    %343 = vmatmul.mubr.bf16.gmra.mxu0 %v294
    %v344 = vpop.f32.mrf.mxu0
    %v345 = vadd.f32 0.0, %v344
    %v346 = vpop.f32.mrf.mxu0
    %v347 = vpop.f32.mrf.mxu0
    %v348 = vadd.f32 0.0, %v347
    %v349 = vpop.f32.mrf.mxu0
    %350 = vmatprep.mubr.bf16.mxu0 0
    %351 = vmatmul.mubr.bf16.gmra.mxu0 %v297
    %v352 = vpop.f32.mrf.mxu0
    %v353 = vadd.f32 0.0, %v352
    %v354 = vpop.f32.mrf.mxu0
    %v355 = vpop.f32.mrf.mxu0
    %v356 = vadd.f32 0.0, %v355
    %v357 = vpop.f32.mrf.mxu0
    %358 = vmatprep.mubr.bf16.mxu0 0
    %359 = vmatmul.mubr.bf16.gmra.mxu0 %v300
    %v360 = vpop.f32.mrf.mxu0
    %v361 = vadd.f32 0.0, %v360
    %v362 = vpop.f32.mrf.mxu0
    %v363 = vpop.f32.mrf.mxu0
    %v364 = vadd.f32 0.0, %v363
    %v365 = vpop.f32.mrf.mxu0
    %366 = vdwg.mxu0
    %v375 = vunpack.c.l.b16 %v164
    %v376 = vunpack.c.l.b16 %v165
    %v377 = vunpack.c.l.b16 %v166
    %v378 = vunpack.c.l.b16 %v167
    %v379 = vunpack.c.l.b16 %v168
    %v380 = vunpack.c.l.b16 %v169
    %v381 = vunpack.c.l.b16 %v170
    %v382 = vunpack.c.l.b16 %v171
    %v383 = vpack.c.b16 %v376, %v375
    %v384 = vpack.c.b16 %v378, %v377
    %v385 = vpack.c.b16 %v380, %v379
    %v386 = vpack.c.b16 %v382, %v381
    %v388 = vsel %vm289, %v383, 0
    %v391 = vsel %vm289, %v384, 0
    %v394 = vsel %vm289, %v385, 0
    %v397 = vsel %vm289, %v386, 0
    %399 = vmatprep.subr.bf16.mxu0 0
    %400 = vmatpush1.bf16.msra.mxu0 0
    %401 = vmatprep.subr.bf16.mxu0 0
    %402 = vmatpush1.bf16.msra.mxu0 0
    %403 = vmatprep.subr.bf16.mxu0 0
    %404 = vmatpush1.bf16.msra.mxu0 0
    %405 = vmatprep.subr.bf16.mxu0 0
    %406 = vmatpush1.bf16.msra.mxu0 0
    %407 = vmatprep.subr.bf16.mxu0 0
    %408 = vmatpush1.bf16.msra.mxu0 0
    %409 = vmatprep.subr.bf16.mxu0 0
    %410 = vmatpush1.bf16.msra.mxu0 0
    %411 = vmatprep.subr.bf16.mxu0 0
    %412 = vmatpush1.bf16.msra.mxu0 %v163
    %413 = vmatprep.subr.bf16.mxu0 0
    %414 = vmatpush1.bf16.msra.mxu0 %v162
    %415 = vmatprep.subr.bf16.mxu0 0
    %416 = vmatpush2.bf16.msra.mxu0 0
    %417 = vmatprep.subr.bf16.mxu0 0
    %418 = vmatpush2.bf16.msra.mxu0 0
    %419 = vmatprep.subr.bf16.mxu0 0
    %420 = vmatpush2.bf16.msra.mxu0 0
    %421 = vmatprep.subr.bf16.mxu0 0
    %422 = vmatpush2.bf16.msra.mxu0 0
    %423 = vmatprep.subr.bf16.mxu0 0
    %424 = vmatpush2.bf16.msra.mxu0 0
    %425 = vmatprep.subr.bf16.mxu0 0
    %426 = vmatpush2.bf16.msra.mxu0 0
    %427 = vmatprep.subr.bf16.mxu0 0
    %428 = vmatpush2.bf16.msra.mxu0 0
    %429 = vmatprep.subr.bf16.mxu0 0
    %430 = vmatpush2.bf16.msra.mxu0 0
    %431 = vmatprep.mubr.bf16.mxu0 0
    %432 = vmatmul.mubr.bf16.gmra.mxu0 %v388
    %v433 = vpop.f32.mrf.mxu0
    %v434 = vadd.f32 %v337, %v433
    %v435 = vpop.f32.mrf.mxu0
    %v436 = vpop.f32.mrf.mxu0
    %v437 = vadd.f32 %v340, %v436
    %v438 = vpop.f32.mrf.mxu0
    %439 = vmatprep.mubr.bf16.mxu0 0
    %440 = vmatmul.mubr.bf16.gmra.mxu0 %v391
    %v441 = vpop.f32.mrf.mxu0
    %v442 = vadd.f32 %v345, %v441
    %v443 = vpop.f32.mrf.mxu0
    %v444 = vpop.f32.mrf.mxu0
    %v445 = vadd.f32 %v348, %v444
    %v446 = vpop.f32.mrf.mxu0
    %447 = vmatprep.mubr.bf16.mxu0 0
    %448 = vmatmul.mubr.bf16.gmra.mxu0 %v394
    %v449 = vpop.f32.mrf.mxu0
    %v450 = vadd.f32 %v353, %v449
    %v451 = vpop.f32.mrf.mxu0
    %v452 = vpop.f32.mrf.mxu0
    %v453 = vadd.f32 %v356, %v452
    %v454 = vpop.f32.mrf.mxu0
    %455 = vmatprep.mubr.bf16.mxu0 0
    %456 = vmatmul.mubr.bf16.gmra.mxu0 %v397
    %v457 = vpop.f32.mrf.mxu0
    %v458 = vadd.f32 %v361, %v457
    %v459 = vpop.f32.mrf.mxu0
    %v460 = vpop.f32.mrf.mxu0
    %v461 = vadd.f32 %v364, %v460
    %v462 = vpop.f32.mrf.mxu0
    %463 = vdwg.mxu0
    %s464 = scalar_lea.vmem %s0, 64
    %v465 = vld [vmem:[%s464] sm:$0xf]
    %v466 = vld [vmem:[%s464 + $0x4] sm:$0xf]
    %v467 = vld [vmem:[%s464 + $0x8] sm:$0xf]
    %v468 = vld [vmem:[%s464 + $0xc] sm:$0xf]
    %v469 = vld [vmem:[%s464 + $0x10] sm:$0xf]
    %v470 = vld [vmem:[%s464 + $0x14] sm:$0xf]
    %v471 = vld [vmem:[%s464 + $0x18] sm:$0xf]
    %v472 = vld [vmem:[%s464 + $0x1c] sm:$0xf]
    %v481 = vunpack.c.l.b16 %v465
    %v482 = vunpack.c.l.b16 %v466
    %v483 = vunpack.c.l.b16 %v467
    %v484 = vunpack.c.l.b16 %v468
    %v485 = vunpack.c.l.b16 %v469
    %v486 = vunpack.c.l.b16 %v470
    %v487 = vunpack.c.l.b16 %v471
    %v488 = vunpack.c.l.b16 %v472
    %v489 = vpack.c.b16 %v482, %v481
    %v490 = vpack.c.b16 %v484, %v483
    %v491 = vpack.c.b16 %v486, %v485
    %v492 = vpack.c.b16 %v488, %v487
    %497 = vmatprep.subr.bf16.mxu0 0
    %498 = vmatpush1.bf16.msra.mxu0 0
    %499 = vmatprep.subr.bf16.mxu0 0
    %500 = vmatpush1.bf16.msra.mxu0 0
    %501 = vmatprep.subr.bf16.mxu0 0
    %502 = vmatpush1.bf16.msra.mxu0 0
    %503 = vmatprep.subr.bf16.mxu0 0
    %504 = vmatpush1.bf16.msra.mxu0 0
    %505 = vmatprep.subr.bf16.mxu0 0
    %506 = vmatpush1.bf16.msra.mxu0 %v492
    %507 = vmatprep.subr.bf16.mxu0 0
    %508 = vmatpush1.bf16.msra.mxu0 %v491
    %509 = vmatprep.subr.bf16.mxu0 0
    %510 = vmatpush1.bf16.msra.mxu0 %v490
    %511 = vmatprep.subr.bf16.mxu0 0
    %512 = vmatpush1.bf16.msra.mxu0 %v489
    %513 = vmatprep.subr.bf16.mxu0 0
    %514 = vmatpush2.bf16.msra.mxu0 0
    %515 = vmatprep.subr.bf16.mxu0 0
    %516 = vmatpush2.bf16.msra.mxu0 0
    %517 = vmatprep.subr.bf16.mxu0 0
    %518 = vmatpush2.bf16.msra.mxu0 0
    %519 = vmatprep.subr.bf16.mxu0 0
    %520 = vmatpush2.bf16.msra.mxu0 0
    %521 = vmatprep.subr.bf16.mxu0 0
    %522 = vmatpush2.bf16.msra.mxu0 0
    %523 = vmatprep.subr.bf16.mxu0 0
    %524 = vmatpush2.bf16.msra.mxu0 0
    %525 = vmatprep.subr.bf16.mxu0 0
    %526 = vmatpush2.bf16.msra.mxu0 0
    %527 = vmatprep.subr.bf16.mxu0 0
    %528 = vmatpush2.bf16.msra.mxu0 0
    %529 = vmatprep.mubr.bf16.mxu0 0
    %530 = vmatmul.mubr.bf16.gmra.mxu0 %v104
    %v531 = vpop.f32.mrf.mxu0
    %v532 = vadd.f32 %v51, %v531
    %v533 = vpop.f32.mrf.mxu0
    %v534 = vpop.f32.mrf.mxu0
    %v535 = vadd.f32 %v56, %v534
    %v536 = vpop.f32.mrf.mxu0
    %537 = vmatprep.mubr.bf16.mxu0 0
    %538 = vmatmul.mubr.bf16.gmra.mxu0 %v107
    %v539 = vpop.f32.mrf.mxu0
    %v540 = vadd.f32 %v61, %v539
    %v541 = vpop.f32.mrf.mxu0
    %v542 = vpop.f32.mrf.mxu0
    %v543 = vadd.f32 %v66, %v542
    %v544 = vpop.f32.mrf.mxu0
    %545 = vdwg.mxu0
    %v546 = vmax.f32 %v532, 0.0
    %v547 = vmax.f32 %v535, 0.0
    %v548 = vmax.f32 %v540, 0.0
    %v549 = vmax.f32 %v543, 0.0
    %v550 = vpack.c.bf16 %v547, %v546
    %v551 = vpack.c.bf16 %v549, %v548
    %s552 = scalar_lea.vmem %s3, 64
    %v553 = vld [vmem:[%s552] sm:$0xf]
    %v554 = vld [vmem:[%s552 + $0x4] sm:$0xf]
    %v555 = vld [vmem:[%s552 + $0x8] sm:$0xf]
    %v556 = vld [vmem:[%s552 + $0xc] sm:$0xf]
    %v557 = vld [vmem:[%s552 + $0x10] sm:$0xf]
    %v558 = vld [vmem:[%s552 + $0x14] sm:$0xf]
    %v559 = vld [vmem:[%s552 + $0x18] sm:$0xf]
    %v560 = vld [vmem:[%s552 + $0x1c] sm:$0xf]
    %v569 = vunpack.c.l.b16 %v553
    %v570 = vunpack.c.l.b16 %v554
    %v571 = vunpack.c.l.b16 %v555
    %v572 = vunpack.c.l.b16 %v556
    %v573 = vunpack.c.l.b16 %v557
    %v574 = vunpack.c.l.b16 %v558
    %v575 = vunpack.c.l.b16 %v559
    %v576 = vunpack.c.l.b16 %v560
    %v577 = vpack.c.b16 %v570, %v569
    %v578 = vpack.c.b16 %v572, %v571
    %v579 = vpack.c.b16 %v574, %v573
    %v580 = vpack.c.b16 %v576, %v575
    %v582 = vsel %vm289, %v577, 0
    %v585 = vsel %vm289, %v578, 0
    %v588 = vsel %vm289, %v579, 0
    %v591 = vsel %vm289, %v580, 0
    %593 = vmatprep.subr.bf16.mxu0 0
    %594 = vmatpush1.bf16.msra.mxu0 0
    %595 = vmatprep.subr.bf16.mxu0 0
    %596 = vmatpush1.bf16.msra.mxu0 0
    %597 = vmatprep.subr.bf16.mxu0 0
    %598 = vmatpush1.bf16.msra.mxu0 0
    %599 = vmatprep.subr.bf16.mxu0 0
    %600 = vmatpush1.bf16.msra.mxu0 0
    %601 = vmatprep.subr.bf16.mxu0 0
    %602 = vmatpush1.bf16.msra.mxu0 0
    %603 = vmatprep.subr.bf16.mxu0 0
    %604 = vmatpush1.bf16.msra.mxu0 0
    %605 = vmatprep.subr.bf16.mxu0 0
    %606 = vmatpush1.bf16.msra.mxu0 %v551
    %607 = vmatprep.subr.bf16.mxu0 0
    %608 = vmatpush1.bf16.msra.mxu0 %v550
    %609 = vmatprep.subr.bf16.mxu0 0
    %610 = vmatpush2.bf16.msra.mxu0 0
    %611 = vmatprep.subr.bf16.mxu0 0
    %612 = vmatpush2.bf16.msra.mxu0 0
    %613 = vmatprep.subr.bf16.mxu0 0
    %614 = vmatpush2.bf16.msra.mxu0 0
    %615 = vmatprep.subr.bf16.mxu0 0
    %616 = vmatpush2.bf16.msra.mxu0 0
    %617 = vmatprep.subr.bf16.mxu0 0
    %618 = vmatpush2.bf16.msra.mxu0 0
    %619 = vmatprep.subr.bf16.mxu0 0
    %620 = vmatpush2.bf16.msra.mxu0 0
    %621 = vmatprep.subr.bf16.mxu0 0
    %622 = vmatpush2.bf16.msra.mxu0 0
    %623 = vmatprep.subr.bf16.mxu0 0
    %624 = vmatpush2.bf16.msra.mxu0 0
    %625 = vmatprep.mubr.bf16.mxu0 0
    %626 = vmatmul.mubr.bf16.gmra.mxu0 %v582
    %v627 = vpop.f32.mrf.mxu0
    %v628 = vadd.f32 0.0, %v627
    %v629 = vpop.f32.mrf.mxu0
    %v630 = vpop.f32.mrf.mxu0
    %v631 = vadd.f32 0.0, %v630
    %v632 = vpop.f32.mrf.mxu0
    %633 = vmatprep.mubr.bf16.mxu0 0
    %634 = vmatmul.mubr.bf16.gmra.mxu0 %v585
    %v635 = vpop.f32.mrf.mxu0
    %v636 = vadd.f32 0.0, %v635
    %v637 = vpop.f32.mrf.mxu0
    %v638 = vpop.f32.mrf.mxu0
    %v639 = vadd.f32 0.0, %v638
    %v640 = vpop.f32.mrf.mxu0
    %641 = vmatprep.mubr.bf16.mxu0 0
    %642 = vmatmul.mubr.bf16.gmra.mxu0 %v588
    %v643 = vpop.f32.mrf.mxu0
    %v644 = vadd.f32 0.0, %v643
    %v645 = vpop.f32.mrf.mxu0
    %v646 = vpop.f32.mrf.mxu0
    %v647 = vadd.f32 0.0, %v646
    %v648 = vpop.f32.mrf.mxu0
    %649 = vmatprep.mubr.bf16.mxu0 0
    %650 = vmatmul.mubr.bf16.gmra.mxu0 %v591
    %v651 = vpop.f32.mrf.mxu0
    %v652 = vadd.f32 0.0, %v651
    %v653 = vpop.f32.mrf.mxu0
    %v654 = vpop.f32.mrf.mxu0
    %v655 = vadd.f32 0.0, %v654
    %v656 = vpop.f32.mrf.mxu0
    %657 = vdwg.mxu0
    %v658 = vadd.f32 %v434, %v628
    %v659 = vadd.f32 %v437, %v631
    %v660 = vadd.f32 %v442, %v636
    %v661 = vadd.f32 %v445, %v639
    %v662 = vadd.f32 %v450, %v644
    %v663 = vadd.f32 %v453, %v647
    %v664 = vadd.f32 %v458, %v652
    %v665 = vadd.f32 %v461, %v655
    %s666 = scalar_lea.vmem %s0, 96
    %v667 = vld [vmem:[%s666] sm:$0xf]
    %v668 = vld [vmem:[%s666 + $0x4] sm:$0xf]
    %v669 = vld [vmem:[%s666 + $0x8] sm:$0xf]
    %v670 = vld [vmem:[%s666 + $0xc] sm:$0xf]
    %v671 = vld [vmem:[%s666 + $0x10] sm:$0xf]
    %v672 = vld [vmem:[%s666 + $0x14] sm:$0xf]
    %v673 = vld [vmem:[%s666 + $0x18] sm:$0xf]
    %v674 = vld [vmem:[%s666 + $0x1c] sm:$0xf]
    %v683 = vunpack.c.l.b16 %v667
    %v684 = vunpack.c.l.b16 %v668
    %v685 = vunpack.c.l.b16 %v669
    %v686 = vunpack.c.l.b16 %v670
    %v687 = vunpack.c.l.b16 %v671
    %v688 = vunpack.c.l.b16 %v672
    %v689 = vunpack.c.l.b16 %v673
    %v690 = vunpack.c.l.b16 %v674
    %v691 = vpack.c.b16 %v684, %v683
    %v692 = vpack.c.b16 %v686, %v685
    %v693 = vpack.c.b16 %v688, %v687
    %v694 = vpack.c.b16 %v690, %v689
    %699 = vmatprep.subr.bf16.mxu0 0
    %700 = vmatpush1.bf16.msra.mxu0 0
    %701 = vmatprep.subr.bf16.mxu0 0
    %702 = vmatpush1.bf16.msra.mxu0 0
    %703 = vmatprep.subr.bf16.mxu0 0
    %704 = vmatpush1.bf16.msra.mxu0 0
    %705 = vmatprep.subr.bf16.mxu0 0
    %706 = vmatpush1.bf16.msra.mxu0 0
    %707 = vmatprep.subr.bf16.mxu0 0
    %708 = vmatpush1.bf16.msra.mxu0 %v694
    %709 = vmatprep.subr.bf16.mxu0 0
    %710 = vmatpush1.bf16.msra.mxu0 %v693
    %711 = vmatprep.subr.bf16.mxu0 0
    %712 = vmatpush1.bf16.msra.mxu0 %v692
    %713 = vmatprep.subr.bf16.mxu0 0
    %714 = vmatpush1.bf16.msra.mxu0 %v691
    %715 = vmatprep.subr.bf16.mxu0 0
    %716 = vmatpush2.bf16.msra.mxu0 0
    %717 = vmatprep.subr.bf16.mxu0 0
    %718 = vmatpush2.bf16.msra.mxu0 0
    %719 = vmatprep.subr.bf16.mxu0 0
    %720 = vmatpush2.bf16.msra.mxu0 0
    %721 = vmatprep.subr.bf16.mxu0 0
    %722 = vmatpush2.bf16.msra.mxu0 0
    %723 = vmatprep.subr.bf16.mxu0 0
    %724 = vmatpush2.bf16.msra.mxu0 0
    %725 = vmatprep.subr.bf16.mxu0 0
    %726 = vmatpush2.bf16.msra.mxu0 0
    %727 = vmatprep.subr.bf16.mxu0 0
    %728 = vmatpush2.bf16.msra.mxu0 0
    %729 = vmatprep.subr.bf16.mxu0 0
    %730 = vmatpush2.bf16.msra.mxu0 0
    %731 = vmatprep.mubr.bf16.mxu0 0
    %732 = vmatmul.mubr.bf16.gmra.mxu0 %v104
    %v733 = vpop.f32.mrf.mxu0
    %v734 = vadd.f32 %v51, %v733
    %v735 = vpop.f32.mrf.mxu0
    %v736 = vpop.f32.mrf.mxu0
    %v737 = vadd.f32 %v56, %v736
    %v738 = vpop.f32.mrf.mxu0
    %739 = vmatprep.mubr.bf16.mxu0 0
    %740 = vmatmul.mubr.bf16.gmra.mxu0 %v107
    %v741 = vpop.f32.mrf.mxu0
    %v742 = vadd.f32 %v61, %v741
    %v743 = vpop.f32.mrf.mxu0
    %v744 = vpop.f32.mrf.mxu0
    %v745 = vadd.f32 %v66, %v744
    %v746 = vpop.f32.mrf.mxu0
    %747 = vdwg.mxu0
    %v748 = vmax.f32 %v734, 0.0
    %v749 = vmax.f32 %v737, 0.0
    %v750 = vmax.f32 %v742, 0.0
    %v751 = vmax.f32 %v745, 0.0
    %v752 = vpack.c.bf16 %v749, %v748
    %v753 = vpack.c.bf16 %v751, %v750
    %s754 = scalar_lea.vmem %s3, 96
    %v755 = vld [vmem:[%s754] sm:$0xf]
    %v756 = vld [vmem:[%s754 + $0x4] sm:$0xf]
    %v757 = vld [vmem:[%s754 + $0x8] sm:$0xf]
    %v758 = vld [vmem:[%s754 + $0xc] sm:$0xf]
    %v759 = vld [vmem:[%s754 + $0x10] sm:$0xf]
    %v760 = vld [vmem:[%s754 + $0x14] sm:$0xf]
    %v761 = vld [vmem:[%s754 + $0x18] sm:$0xf]
    %v762 = vld [vmem:[%s754 + $0x1c] sm:$0xf]
    %v771 = vunpack.c.l.b16 %v755
    %v772 = vunpack.c.l.b16 %v756
    %v773 = vunpack.c.l.b16 %v757
    %v774 = vunpack.c.l.b16 %v758
    %v775 = vunpack.c.l.b16 %v759
    %v776 = vunpack.c.l.b16 %v760
    %v777 = vunpack.c.l.b16 %v761
    %v778 = vunpack.c.l.b16 %v762
    %v779 = vpack.c.b16 %v772, %v771
    %v780 = vpack.c.b16 %v774, %v773
    %v781 = vpack.c.b16 %v776, %v775
    %v782 = vpack.c.b16 %v778, %v777
    %v784 = vsel %vm289, %v779, 0
    %v787 = vsel %vm289, %v780, 0
    %v790 = vsel %vm289, %v781, 0
    %v793 = vsel %vm289, %v782, 0
    %795 = vmatprep.subr.bf16.mxu0 0
    %796 = vmatpush1.bf16.msra.mxu0 0
    %797 = vmatprep.subr.bf16.mxu0 0
    %798 = vmatpush1.bf16.msra.mxu0 0
    %799 = vmatprep.subr.bf16.mxu0 0
    %800 = vmatpush1.bf16.msra.mxu0 0
    %801 = vmatprep.subr.bf16.mxu0 0
    %802 = vmatpush1.bf16.msra.mxu0 0
    %803 = vmatprep.subr.bf16.mxu0 0
    %804 = vmatpush1.bf16.msra.mxu0 0
    %805 = vmatprep.subr.bf16.mxu0 0
    %806 = vmatpush1.bf16.msra.mxu0 0
    %807 = vmatprep.subr.bf16.mxu0 0
    %808 = vmatpush1.bf16.msra.mxu0 %v753
    %809 = vmatprep.subr.bf16.mxu0 0
    %810 = vmatpush1.bf16.msra.mxu0 %v752
    %811 = vmatprep.subr.bf16.mxu0 0
    %812 = vmatpush2.bf16.msra.mxu0 0
    %813 = vmatprep.subr.bf16.mxu0 0
    %814 = vmatpush2.bf16.msra.mxu0 0
    %815 = vmatprep.subr.bf16.mxu0 0
    %816 = vmatpush2.bf16.msra.mxu0 0
    %817 = vmatprep.subr.bf16.mxu0 0
    %818 = vmatpush2.bf16.msra.mxu0 0
    %819 = vmatprep.subr.bf16.mxu0 0
    %820 = vmatpush2.bf16.msra.mxu0 0
    %821 = vmatprep.subr.bf16.mxu0 0
    %822 = vmatpush2.bf16.msra.mxu0 0
    %823 = vmatprep.subr.bf16.mxu0 0
    %824 = vmatpush2.bf16.msra.mxu0 0
    %825 = vmatprep.subr.bf16.mxu0 0
    %826 = vmatpush2.bf16.msra.mxu0 0
    %827 = vmatprep.mubr.bf16.mxu0 0
    %828 = vmatmul.mubr.bf16.gmra.mxu0 %v784
    %v829 = vpop.f32.mrf.mxu0
    %v830 = vadd.f32 0.0, %v829
    %v831 = vpop.f32.mrf.mxu0
    %v832 = vpop.f32.mrf.mxu0
    %v833 = vadd.f32 0.0, %v832
    %v834 = vpop.f32.mrf.mxu0
    %835 = vmatprep.mubr.bf16.mxu0 0
    %836 = vmatmul.mubr.bf16.gmra.mxu0 %v787
    %v837 = vpop.f32.mrf.mxu0
    %v838 = vadd.f32 0.0, %v837
    %v839 = vpop.f32.mrf.mxu0
    %v840 = vpop.f32.mrf.mxu0
    %v841 = vadd.f32 0.0, %v840
    %v842 = vpop.f32.mrf.mxu0
    %843 = vmatprep.mubr.bf16.mxu0 0
    %844 = vmatmul.mubr.bf16.gmra.mxu0 %v790
    %v845 = vpop.f32.mrf.mxu0
    %v846 = vadd.f32 0.0, %v845
    %v847 = vpop.f32.mrf.mxu0
    %v848 = vpop.f32.mrf.mxu0
    %v849 = vadd.f32 0.0, %v848
    %v850 = vpop.f32.mrf.mxu0
    %851 = vmatprep.mubr.bf16.mxu0 0
    %852 = vmatmul.mubr.bf16.gmra.mxu0 %v793
    %v853 = vpop.f32.mrf.mxu0
    %v854 = vadd.f32 0.0, %v853
    %v855 = vpop.f32.mrf.mxu0
    %v856 = vpop.f32.mrf.mxu0
    %v857 = vadd.f32 0.0, %v856
    %v858 = vpop.f32.mrf.mxu0
    %859 = vdwg.mxu0
    %v860 = vadd.f32 %v658, %v830
    %v861 = vadd.f32 %v659, %v833
    %v862 = vadd.f32 %v660, %v838
    %v863 = vadd.f32 %v661, %v841
    %v864 = vadd.f32 %v662, %v846
    %v865 = vadd.f32 %v663, %v849
    %v866 = vadd.f32 %v664, %v854
    %v867 = vadd.f32 %v665, %v857
    %s868 = scalar_lea.vmem %s0, 128
    %v869 = vld [vmem:[%s868] sm:$0xf]
    %v870 = vld [vmem:[%s868 + $0x4] sm:$0xf]
    %v871 = vld [vmem:[%s868 + $0x8] sm:$0xf]
    %v872 = vld [vmem:[%s868 + $0xc] sm:$0xf]
    %v873 = vld [vmem:[%s868 + $0x10] sm:$0xf]
    %v874 = vld [vmem:[%s868 + $0x14] sm:$0xf]
    %v875 = vld [vmem:[%s868 + $0x18] sm:$0xf]
    %v876 = vld [vmem:[%s868 + $0x1c] sm:$0xf]
    %v885 = vunpack.c.l.b16 %v869
    %v886 = vunpack.c.l.b16 %v870
    %v887 = vunpack.c.l.b16 %v871
    %v888 = vunpack.c.l.b16 %v872
    %v889 = vunpack.c.l.b16 %v873
    %v890 = vunpack.c.l.b16 %v874
    %v891 = vunpack.c.l.b16 %v875
    %v892 = vunpack.c.l.b16 %v876
    %v893 = vpack.c.b16 %v886, %v885
    %v894 = vpack.c.b16 %v888, %v887
    %v895 = vpack.c.b16 %v890, %v889
    %v896 = vpack.c.b16 %v892, %v891
    %901 = vmatprep.subr.bf16.mxu0 0
    %902 = vmatpush1.bf16.msra.mxu0 0
    %903 = vmatprep.subr.bf16.mxu0 0
    %904 = vmatpush1.bf16.msra.mxu0 0
    %905 = vmatprep.subr.bf16.mxu0 0
    %906 = vmatpush1.bf16.msra.mxu0 0
    %907 = vmatprep.subr.bf16.mxu0 0
    %908 = vmatpush1.bf16.msra.mxu0 0
    %909 = vmatprep.subr.bf16.mxu0 0
    %910 = vmatpush1.bf16.msra.mxu0 %v896
    %911 = vmatprep.subr.bf16.mxu0 0
    %912 = vmatpush1.bf16.msra.mxu0 %v895
    %913 = vmatprep.subr.bf16.mxu0 0
    %914 = vmatpush1.bf16.msra.mxu0 %v894
    %915 = vmatprep.subr.bf16.mxu0 0
    %916 = vmatpush1.bf16.msra.mxu0 %v893
    %917 = vmatprep.subr.bf16.mxu0 0
    %918 = vmatpush2.bf16.msra.mxu0 0
    %919 = vmatprep.subr.bf16.mxu0 0
    %920 = vmatpush2.bf16.msra.mxu0 0
    %921 = vmatprep.subr.bf16.mxu0 0
    %922 = vmatpush2.bf16.msra.mxu0 0
    %923 = vmatprep.subr.bf16.mxu0 0
    %924 = vmatpush2.bf16.msra.mxu0 0
    %925 = vmatprep.subr.bf16.mxu0 0
    %926 = vmatpush2.bf16.msra.mxu0 0
    %927 = vmatprep.subr.bf16.mxu0 0
    %928 = vmatpush2.bf16.msra.mxu0 0
    %929 = vmatprep.subr.bf16.mxu0 0
    %930 = vmatpush2.bf16.msra.mxu0 0
    %931 = vmatprep.subr.bf16.mxu0 0
    %932 = vmatpush2.bf16.msra.mxu0 0
    %933 = vmatprep.mubr.bf16.mxu0 0
    %934 = vmatmul.mubr.bf16.gmra.mxu0 %v104
    %v935 = vpop.f32.mrf.mxu0
    %v936 = vadd.f32 %v51, %v935
    %v937 = vpop.f32.mrf.mxu0
    %v938 = vpop.f32.mrf.mxu0
    %v939 = vadd.f32 %v56, %v938
    %v940 = vpop.f32.mrf.mxu0
    %941 = vmatprep.mubr.bf16.mxu0 0
    %942 = vmatmul.mubr.bf16.gmra.mxu0 %v107
    %v943 = vpop.f32.mrf.mxu0
    %v944 = vadd.f32 %v61, %v943
    %v945 = vpop.f32.mrf.mxu0
    %v946 = vpop.f32.mrf.mxu0
    %v947 = vadd.f32 %v66, %v946
    %v948 = vpop.f32.mrf.mxu0
    %949 = vdwg.mxu0
    %v950 = vmax.f32 %v936, 0.0
    %v951 = vmax.f32 %v939, 0.0
    %v952 = vmax.f32 %v944, 0.0
    %v953 = vmax.f32 %v947, 0.0
    %v954 = vpack.c.bf16 %v951, %v950
    %v955 = vpack.c.bf16 %v953, %v952
    %s956 = scalar_lea.vmem %s3, 128
    %v957 = vld [vmem:[%s956] sm:$0xf]
    %v958 = vld [vmem:[%s956 + $0x4] sm:$0xf]
    %v959 = vld [vmem:[%s956 + $0x8] sm:$0xf]
    %v960 = vld [vmem:[%s956 + $0xc] sm:$0xf]
    %v961 = vld [vmem:[%s956 + $0x10] sm:$0xf]
    %v962 = vld [vmem:[%s956 + $0x14] sm:$0xf]
    %v963 = vld [vmem:[%s956 + $0x18] sm:$0xf]
    %v964 = vld [vmem:[%s956 + $0x1c] sm:$0xf]
    %v973 = vunpack.c.l.b16 %v957
    %v974 = vunpack.c.l.b16 %v958
    %v975 = vunpack.c.l.b16 %v959
    %v976 = vunpack.c.l.b16 %v960
    %v977 = vunpack.c.l.b16 %v961
    %v978 = vunpack.c.l.b16 %v962
    %v979 = vunpack.c.l.b16 %v963
    %v980 = vunpack.c.l.b16 %v964
    %v981 = vpack.c.b16 %v974, %v973
    %v982 = vpack.c.b16 %v976, %v975
    %v983 = vpack.c.b16 %v978, %v977
    %v984 = vpack.c.b16 %v980, %v979
    %v986 = vsel %vm289, %v981, 0
    %v989 = vsel %vm289, %v982, 0
    %v992 = vsel %vm289, %v983, 0
    %v995 = vsel %vm289, %v984, 0
    %997 = vmatprep.subr.bf16.mxu0 0
    %998 = vmatpush1.bf16.msra.mxu0 0
    %999 = vmatprep.subr.bf16.mxu0 0
    %1000 = vmatpush1.bf16.msra.mxu0 0
    %1001 = vmatprep.subr.bf16.mxu0 0
    %1002 = vmatpush1.bf16.msra.mxu0 0
    %1003 = vmatprep.subr.bf16.mxu0 0
    %1004 = vmatpush1.bf16.msra.mxu0 0
    %1005 = vmatprep.subr.bf16.mxu0 0
    %1006 = vmatpush1.bf16.msra.mxu0 0
    %1007 = vmatprep.subr.bf16.mxu0 0
    %1008 = vmatpush1.bf16.msra.mxu0 0
    %1009 = vmatprep.subr.bf16.mxu0 0
    %1010 = vmatpush1.bf16.msra.mxu0 %v955
    %1011 = vmatprep.subr.bf16.mxu0 0
    %1012 = vmatpush1.bf16.msra.mxu0 %v954
    %1013 = vmatprep.subr.bf16.mxu0 0
    %1014 = vmatpush2.bf16.msra.mxu0 0
    %1015 = vmatprep.subr.bf16.mxu0 0
    %1016 = vmatpush2.bf16.msra.mxu0 0
    %1017 = vmatprep.subr.bf16.mxu0 0
    %1018 = vmatpush2.bf16.msra.mxu0 0
    %1019 = vmatprep.subr.bf16.mxu0 0
    %1020 = vmatpush2.bf16.msra.mxu0 0
    %1021 = vmatprep.subr.bf16.mxu0 0
    %1022 = vmatpush2.bf16.msra.mxu0 0
    %1023 = vmatprep.subr.bf16.mxu0 0
    %1024 = vmatpush2.bf16.msra.mxu0 0
    %1025 = vmatprep.subr.bf16.mxu0 0
    %1026 = vmatpush2.bf16.msra.mxu0 0
    %1027 = vmatprep.subr.bf16.mxu0 0
    %1028 = vmatpush2.bf16.msra.mxu0 0
    %1029 = vmatprep.mubr.bf16.mxu0 0
    %1030 = vmatmul.mubr.bf16.gmra.mxu0 %v986
    %v1031 = vpop.f32.mrf.mxu0
    %v1032 = vadd.f32 0.0, %v1031
    %v1033 = vpop.f32.mrf.mxu0
    %v1034 = vpop.f32.mrf.mxu0
    %v1035 = vadd.f32 0.0, %v1034
    %v1036 = vpop.f32.mrf.mxu0
    %1037 = vmatprep.mubr.bf16.mxu0 0
    %1038 = vmatmul.mubr.bf16.gmra.mxu0 %v989
    %v1039 = vpop.f32.mrf.mxu0
    %v1040 = vadd.f32 0.0, %v1039
    %v1041 = vpop.f32.mrf.mxu0
    %v1042 = vpop.f32.mrf.mxu0
    %v1043 = vadd.f32 0.0, %v1042
    %v1044 = vpop.f32.mrf.mxu0
    %1045 = vmatprep.mubr.bf16.mxu0 0
    %1046 = vmatmul.mubr.bf16.gmra.mxu0 %v992
    %v1047 = vpop.f32.mrf.mxu0
    %v1048 = vadd.f32 0.0, %v1047
    %v1049 = vpop.f32.mrf.mxu0
    %v1050 = vpop.f32.mrf.mxu0
    %v1051 = vadd.f32 0.0, %v1050
    %v1052 = vpop.f32.mrf.mxu0
    %1053 = vmatprep.mubr.bf16.mxu0 0
    %1054 = vmatmul.mubr.bf16.gmra.mxu0 %v995
    %v1055 = vpop.f32.mrf.mxu0
    %v1056 = vadd.f32 0.0, %v1055
    %v1057 = vpop.f32.mrf.mxu0
    %v1058 = vpop.f32.mrf.mxu0
    %v1059 = vadd.f32 0.0, %v1058
    %v1060 = vpop.f32.mrf.mxu0
    %1061 = vdwg.mxu0
    %v1062 = vadd.f32 %v860, %v1032
    %v1063 = vadd.f32 %v861, %v1035
    %v1064 = vadd.f32 %v862, %v1040
    %v1065 = vadd.f32 %v863, %v1043
    %v1066 = vadd.f32 %v864, %v1048
    %v1067 = vadd.f32 %v865, %v1051
    %v1068 = vadd.f32 %v866, %v1056
    %v1069 = vadd.f32 %v867, %v1059
    %s1070 = scalar_lea.vmem %s0, 160
    %v1071 = vld [vmem:[%s1070] sm:$0xf]
    %v1072 = vld [vmem:[%s1070 + $0x4] sm:$0xf]
    %v1073 = vld [vmem:[%s1070 + $0x8] sm:$0xf]
    %v1074 = vld [vmem:[%s1070 + $0xc] sm:$0xf]
    %v1075 = vld [vmem:[%s1070 + $0x10] sm:$0xf]
    %v1076 = vld [vmem:[%s1070 + $0x14] sm:$0xf]
    %v1077 = vld [vmem:[%s1070 + $0x18] sm:$0xf]
    %v1078 = vld [vmem:[%s1070 + $0x1c] sm:$0xf]
    %v1087 = vunpack.c.l.b16 %v1071
    %v1088 = vunpack.c.l.b16 %v1072
    %v1089 = vunpack.c.l.b16 %v1073
    %v1090 = vunpack.c.l.b16 %v1074
    %v1091 = vunpack.c.l.b16 %v1075
    %v1092 = vunpack.c.l.b16 %v1076
    %v1093 = vunpack.c.l.b16 %v1077
    %v1094 = vunpack.c.l.b16 %v1078
    %v1095 = vpack.c.b16 %v1088, %v1087
    %v1096 = vpack.c.b16 %v1090, %v1089
    %v1097 = vpack.c.b16 %v1092, %v1091
    %v1098 = vpack.c.b16 %v1094, %v1093
    %1103 = vmatprep.subr.bf16.mxu0 0
    %1104 = vmatpush1.bf16.msra.mxu0 0
    %1105 = vmatprep.subr.bf16.mxu0 0
    %1106 = vmatpush1.bf16.msra.mxu0 0
    %1107 = vmatprep.subr.bf16.mxu0 0
    %1108 = vmatpush1.bf16.msra.mxu0 0
    %1109 = vmatprep.subr.bf16.mxu0 0
    %1110 = vmatpush1.bf16.msra.mxu0 0
    %1111 = vmatprep.subr.bf16.mxu0 0
    %1112 = vmatpush1.bf16.msra.mxu0 %v1098
    %1113 = vmatprep.subr.bf16.mxu0 0
    %1114 = vmatpush1.bf16.msra.mxu0 %v1097
    %1115 = vmatprep.subr.bf16.mxu0 0
    %1116 = vmatpush1.bf16.msra.mxu0 %v1096
    %1117 = vmatprep.subr.bf16.mxu0 0
    %1118 = vmatpush1.bf16.msra.mxu0 %v1095
    %1119 = vmatprep.subr.bf16.mxu0 0
    %1120 = vmatpush2.bf16.msra.mxu0 0
    %1121 = vmatprep.subr.bf16.mxu0 0
    %1122 = vmatpush2.bf16.msra.mxu0 0
    %1123 = vmatprep.subr.bf16.mxu0 0
    %1124 = vmatpush2.bf16.msra.mxu0 0
    %1125 = vmatprep.subr.bf16.mxu0 0
    %1126 = vmatpush2.bf16.msra.mxu0 0
    %1127 = vmatprep.subr.bf16.mxu0 0
    %1128 = vmatpush2.bf16.msra.mxu0 0
    %1129 = vmatprep.subr.bf16.mxu0 0
    %1130 = vmatpush2.bf16.msra.mxu0 0
    %1131 = vmatprep.subr.bf16.mxu0 0
    %1132 = vmatpush2.bf16.msra.mxu0 0
    %1133 = vmatprep.subr.bf16.mxu0 0
    %1134 = vmatpush2.bf16.msra.mxu0 0
    %1135 = vmatprep.mubr.bf16.mxu0 0
    %1136 = vmatmul.mubr.bf16.gmra.mxu0 %v104
    %v1137 = vpop.f32.mrf.mxu0
    %v1138 = vadd.f32 %v51, %v1137
    %v1139 = vpop.f32.mrf.mxu0
    %v1140 = vpop.f32.mrf.mxu0
    %v1141 = vadd.f32 %v56, %v1140
    %v1142 = vpop.f32.mrf.mxu0
    %1143 = vmatprep.mubr.bf16.mxu0 0
    %1144 = vmatmul.mubr.bf16.gmra.mxu0 %v107
    %v1145 = vpop.f32.mrf.mxu0
    %v1146 = vadd.f32 %v61, %v1145
    %v1147 = vpop.f32.mrf.mxu0
    %v1148 = vpop.f32.mrf.mxu0
    %v1149 = vadd.f32 %v66, %v1148
    %v1150 = vpop.f32.mrf.mxu0
    %1151 = vdwg.mxu0
    %v1152 = vmax.f32 %v1138, 0.0
    %v1153 = vmax.f32 %v1141, 0.0
    %v1154 = vmax.f32 %v1146, 0.0
    %v1155 = vmax.f32 %v1149, 0.0
    %v1156 = vpack.c.bf16 %v1153, %v1152
    %v1157 = vpack.c.bf16 %v1155, %v1154
    %s1158 = scalar_lea.vmem %s3, 160
    %v1159 = vld [vmem:[%s1158] sm:$0xf]
    %v1160 = vld [vmem:[%s1158 + $0x4] sm:$0xf]
    %v1161 = vld [vmem:[%s1158 + $0x8] sm:$0xf]
    %v1162 = vld [vmem:[%s1158 + $0xc] sm:$0xf]
    %v1163 = vld [vmem:[%s1158 + $0x10] sm:$0xf]
    %v1164 = vld [vmem:[%s1158 + $0x14] sm:$0xf]
    %v1165 = vld [vmem:[%s1158 + $0x18] sm:$0xf]
    %v1166 = vld [vmem:[%s1158 + $0x1c] sm:$0xf]
    %v1175 = vunpack.c.l.b16 %v1159
    %v1176 = vunpack.c.l.b16 %v1160
    %v1177 = vunpack.c.l.b16 %v1161
    %v1178 = vunpack.c.l.b16 %v1162
    %v1179 = vunpack.c.l.b16 %v1163
    %v1180 = vunpack.c.l.b16 %v1164
    %v1181 = vunpack.c.l.b16 %v1165
    %v1182 = vunpack.c.l.b16 %v1166
    %v1183 = vpack.c.b16 %v1176, %v1175
    %v1184 = vpack.c.b16 %v1178, %v1177
    %v1185 = vpack.c.b16 %v1180, %v1179
    %v1186 = vpack.c.b16 %v1182, %v1181
    %v1188 = vsel %vm289, %v1183, 0
    %v1191 = vsel %vm289, %v1184, 0
    %v1194 = vsel %vm289, %v1185, 0
    %v1197 = vsel %vm289, %v1186, 0
    %1199 = vmatprep.subr.bf16.mxu0 0
    %1200 = vmatpush1.bf16.msra.mxu0 0
    %1201 = vmatprep.subr.bf16.mxu0 0
    %1202 = vmatpush1.bf16.msra.mxu0 0
    %1203 = vmatprep.subr.bf16.mxu0 0
    %1204 = vmatpush1.bf16.msra.mxu0 0
    %1205 = vmatprep.subr.bf16.mxu0 0
    %1206 = vmatpush1.bf16.msra.mxu0 0
    %1207 = vmatprep.subr.bf16.mxu0 0
    %1208 = vmatpush1.bf16.msra.mxu0 0
    %1209 = vmatprep.subr.bf16.mxu0 0
    %1210 = vmatpush1.bf16.msra.mxu0 0
    %1211 = vmatprep.subr.bf16.mxu0 0
    %1212 = vmatpush1.bf16.msra.mxu0 %v1157
    %1213 = vmatprep.subr.bf16.mxu0 0
    %1214 = vmatpush1.bf16.msra.mxu0 %v1156
    %1215 = vmatprep.subr.bf16.mxu0 0
    %1216 = vmatpush2.bf16.msra.mxu0 0
    %1217 = vmatprep.subr.bf16.mxu0 0
    %1218 = vmatpush2.bf16.msra.mxu0 0
    %1219 = vmatprep.subr.bf16.mxu0 0
    %1220 = vmatpush2.bf16.msra.mxu0 0
    %1221 = vmatprep.subr.bf16.mxu0 0
    %1222 = vmatpush2.bf16.msra.mxu0 0
    %1223 = vmatprep.subr.bf16.mxu0 0
    %1224 = vmatpush2.bf16.msra.mxu0 0
    %1225 = vmatprep.subr.bf16.mxu0 0
    %1226 = vmatpush2.bf16.msra.mxu0 0
    %1227 = vmatprep.subr.bf16.mxu0 0
    %1228 = vmatpush2.bf16.msra.mxu0 0
    %1229 = vmatprep.subr.bf16.mxu0 0
    %1230 = vmatpush2.bf16.msra.mxu0 0
    %1231 = vmatprep.mubr.bf16.mxu0 0
    %1232 = vmatmul.mubr.bf16.gmra.mxu0 %v1188
    %v1233 = vpop.f32.mrf.mxu0
    %v1234 = vadd.f32 0.0, %v1233
    %v1235 = vpop.f32.mrf.mxu0
    %v1236 = vpop.f32.mrf.mxu0
    %v1237 = vadd.f32 0.0, %v1236
    %v1238 = vpop.f32.mrf.mxu0
    %1239 = vmatprep.mubr.bf16.mxu0 0
    %1240 = vmatmul.mubr.bf16.gmra.mxu0 %v1191
    %v1241 = vpop.f32.mrf.mxu0
    %v1242 = vadd.f32 0.0, %v1241
    %v1243 = vpop.f32.mrf.mxu0
    %v1244 = vpop.f32.mrf.mxu0
    %v1245 = vadd.f32 0.0, %v1244
    %v1246 = vpop.f32.mrf.mxu0
    %1247 = vmatprep.mubr.bf16.mxu0 0
    %1248 = vmatmul.mubr.bf16.gmra.mxu0 %v1194
    %v1249 = vpop.f32.mrf.mxu0
    %v1250 = vadd.f32 0.0, %v1249
    %v1251 = vpop.f32.mrf.mxu0
    %v1252 = vpop.f32.mrf.mxu0
    %v1253 = vadd.f32 0.0, %v1252
    %v1254 = vpop.f32.mrf.mxu0
    %1255 = vmatprep.mubr.bf16.mxu0 0
    %1256 = vmatmul.mubr.bf16.gmra.mxu0 %v1197
    %v1257 = vpop.f32.mrf.mxu0
    %v1258 = vadd.f32 0.0, %v1257
    %v1259 = vpop.f32.mrf.mxu0
    %v1260 = vpop.f32.mrf.mxu0
    %v1261 = vadd.f32 0.0, %v1260
    %v1262 = vpop.f32.mrf.mxu0
    %1263 = vdwg.mxu0
    %v1264 = vadd.f32 %v1062, %v1234
    %v1265 = vadd.f32 %v1063, %v1237
    %v1266 = vadd.f32 %v1064, %v1242
    %v1267 = vadd.f32 %v1065, %v1245
    %v1268 = vadd.f32 %v1066, %v1250
    %v1269 = vadd.f32 %v1067, %v1253
    %v1270 = vadd.f32 %v1068, %v1258
    %v1271 = vadd.f32 %v1069, %v1261
    %s1272 = scalar_lea.vmem %s0, 192
    %v1273 = vld [vmem:[%s1272] sm:$0xf]
    %v1274 = vld [vmem:[%s1272 + $0x4] sm:$0xf]
    %v1275 = vld [vmem:[%s1272 + $0x8] sm:$0xf]
    %v1276 = vld [vmem:[%s1272 + $0xc] sm:$0xf]
    %v1277 = vld [vmem:[%s1272 + $0x10] sm:$0xf]
    %v1278 = vld [vmem:[%s1272 + $0x14] sm:$0xf]
    %v1279 = vld [vmem:[%s1272 + $0x18] sm:$0xf]
    %v1280 = vld [vmem:[%s1272 + $0x1c] sm:$0xf]
    %v1289 = vunpack.c.l.b16 %v1273
    %v1290 = vunpack.c.l.b16 %v1274
    %v1291 = vunpack.c.l.b16 %v1275
    %v1292 = vunpack.c.l.b16 %v1276
    %v1293 = vunpack.c.l.b16 %v1277
    %v1294 = vunpack.c.l.b16 %v1278
    %v1295 = vunpack.c.l.b16 %v1279
    %v1296 = vunpack.c.l.b16 %v1280
    %v1297 = vpack.c.b16 %v1290, %v1289
    %v1298 = vpack.c.b16 %v1292, %v1291
    %v1299 = vpack.c.b16 %v1294, %v1293
    %v1300 = vpack.c.b16 %v1296, %v1295
    %1305 = vmatprep.subr.bf16.mxu0 0
    %1306 = vmatpush1.bf16.msra.mxu0 0
    %1307 = vmatprep.subr.bf16.mxu0 0
    %1308 = vmatpush1.bf16.msra.mxu0 0
    %1309 = vmatprep.subr.bf16.mxu0 0
    %1310 = vmatpush1.bf16.msra.mxu0 0
    %1311 = vmatprep.subr.bf16.mxu0 0
    %1312 = vmatpush1.bf16.msra.mxu0 0
    %1313 = vmatprep.subr.bf16.mxu0 0
    %1314 = vmatpush1.bf16.msra.mxu0 %v1300
    %1315 = vmatprep.subr.bf16.mxu0 0
    %1316 = vmatpush1.bf16.msra.mxu0 %v1299
    %1317 = vmatprep.subr.bf16.mxu0 0
    %1318 = vmatpush1.bf16.msra.mxu0 %v1298
    %1319 = vmatprep.subr.bf16.mxu0 0
    %1320 = vmatpush1.bf16.msra.mxu0 %v1297
    %1321 = vmatprep.subr.bf16.mxu0 0
    %1322 = vmatpush2.bf16.msra.mxu0 0
    %1323 = vmatprep.subr.bf16.mxu0 0
    %1324 = vmatpush2.bf16.msra.mxu0 0
    %1325 = vmatprep.subr.bf16.mxu0 0
    %1326 = vmatpush2.bf16.msra.mxu0 0
    %1327 = vmatprep.subr.bf16.mxu0 0
    %1328 = vmatpush2.bf16.msra.mxu0 0
    %1329 = vmatprep.subr.bf16.mxu0 0
    %1330 = vmatpush2.bf16.msra.mxu0 0
    %1331 = vmatprep.subr.bf16.mxu0 0
    %1332 = vmatpush2.bf16.msra.mxu0 0
    %1333 = vmatprep.subr.bf16.mxu0 0
    %1334 = vmatpush2.bf16.msra.mxu0 0
    %1335 = vmatprep.subr.bf16.mxu0 0
    %1336 = vmatpush2.bf16.msra.mxu0 0
    %1337 = vmatprep.mubr.bf16.mxu0 0
    %1338 = vmatmul.mubr.bf16.gmra.mxu0 %v104
    %v1339 = vpop.f32.mrf.mxu0
    %v1340 = vadd.f32 %v51, %v1339
    %v1341 = vpop.f32.mrf.mxu0
    %v1342 = vpop.f32.mrf.mxu0
    %v1343 = vadd.f32 %v56, %v1342
    %v1344 = vpop.f32.mrf.mxu0
    %1345 = vmatprep.mubr.bf16.mxu0 0
    %1346 = vmatmul.mubr.bf16.gmra.mxu0 %v107
    %v1347 = vpop.f32.mrf.mxu0
    %v1348 = vadd.f32 %v61, %v1347
    %v1349 = vpop.f32.mrf.mxu0
    %v1350 = vpop.f32.mrf.mxu0
    %v1351 = vadd.f32 %v66, %v1350
    %v1352 = vpop.f32.mrf.mxu0
    %1353 = vdwg.mxu0
    %v1354 = vmax.f32 %v1340, 0.0
    %v1355 = vmax.f32 %v1343, 0.0
    %v1356 = vmax.f32 %v1348, 0.0
    %v1357 = vmax.f32 %v1351, 0.0
    %v1358 = vpack.c.bf16 %v1355, %v1354
    %v1359 = vpack.c.bf16 %v1357, %v1356
    %s1360 = scalar_lea.vmem %s3, 192
    %v1361 = vld [vmem:[%s1360] sm:$0xf]
    %v1362 = vld [vmem:[%s1360 + $0x4] sm:$0xf]
    %v1363 = vld [vmem:[%s1360 + $0x8] sm:$0xf]
    %v1364 = vld [vmem:[%s1360 + $0xc] sm:$0xf]
    %v1365 = vld [vmem:[%s1360 + $0x10] sm:$0xf]
    %v1366 = vld [vmem:[%s1360 + $0x14] sm:$0xf]
    %v1367 = vld [vmem:[%s1360 + $0x18] sm:$0xf]
    %v1368 = vld [vmem:[%s1360 + $0x1c] sm:$0xf]
    %v1377 = vunpack.c.l.b16 %v1361
    %v1378 = vunpack.c.l.b16 %v1362
    %v1379 = vunpack.c.l.b16 %v1363
    %v1380 = vunpack.c.l.b16 %v1364
    %v1381 = vunpack.c.l.b16 %v1365
    %v1382 = vunpack.c.l.b16 %v1366
    %v1383 = vunpack.c.l.b16 %v1367
    %v1384 = vunpack.c.l.b16 %v1368
    %v1385 = vpack.c.b16 %v1378, %v1377
    %v1386 = vpack.c.b16 %v1380, %v1379
    %v1387 = vpack.c.b16 %v1382, %v1381
    %v1388 = vpack.c.b16 %v1384, %v1383
    %v1390 = vsel %vm289, %v1385, 0
    %v1393 = vsel %vm289, %v1386, 0
    %v1396 = vsel %vm289, %v1387, 0
    %v1399 = vsel %vm289, %v1388, 0
    %1401 = vmatprep.subr.bf16.mxu0 0
    %1402 = vmatpush1.bf16.msra.mxu0 0
    %1403 = vmatprep.subr.bf16.mxu0 0
    %1404 = vmatpush1.bf16.msra.mxu0 0
    %1405 = vmatprep.subr.bf16.mxu0 0
    %1406 = vmatpush1.bf16.msra.mxu0 0
    %1407 = vmatprep.subr.bf16.mxu0 0
    %1408 = vmatpush1.bf16.msra.mxu0 0
    %1409 = vmatprep.subr.bf16.mxu0 0
    %1410 = vmatpush1.bf16.msra.mxu0 0
    %1411 = vmatprep.subr.bf16.mxu0 0
    %1412 = vmatpush1.bf16.msra.mxu0 0
    %1413 = vmatprep.subr.bf16.mxu0 0
    %1414 = vmatpush1.bf16.msra.mxu0 %v1359
    %1415 = vmatprep.subr.bf16.mxu0 0
    %1416 = vmatpush1.bf16.msra.mxu0 %v1358
    %1417 = vmatprep.subr.bf16.mxu0 0
    %1418 = vmatpush2.bf16.msra.mxu0 0
    %1419 = vmatprep.subr.bf16.mxu0 0
    %1420 = vmatpush2.bf16.msra.mxu0 0
    %1421 = vmatprep.subr.bf16.mxu0 0
    %1422 = vmatpush2.bf16.msra.mxu0 0
    %1423 = vmatprep.subr.bf16.mxu0 0
    %1424 = vmatpush2.bf16.msra.mxu0 0
    %1425 = vmatprep.subr.bf16.mxu0 0
    %1426 = vmatpush2.bf16.msra.mxu0 0
    %1427 = vmatprep.subr.bf16.mxu0 0
    %1428 = vmatpush2.bf16.msra.mxu0 0
    %1429 = vmatprep.subr.bf16.mxu0 0
    %1430 = vmatpush2.bf16.msra.mxu0 0
    %1431 = vmatprep.subr.bf16.mxu0 0
    %1432 = vmatpush2.bf16.msra.mxu0 0
    %1433 = vmatprep.mubr.bf16.mxu0 0
    %1434 = vmatmul.mubr.bf16.gmra.mxu0 %v1390
    %v1435 = vpop.f32.mrf.mxu0
    %v1436 = vadd.f32 0.0, %v1435
    %v1437 = vpop.f32.mrf.mxu0
    %v1438 = vpop.f32.mrf.mxu0
    %v1439 = vadd.f32 0.0, %v1438
    %v1440 = vpop.f32.mrf.mxu0
    %1441 = vmatprep.mubr.bf16.mxu0 0
    %1442 = vmatmul.mubr.bf16.gmra.mxu0 %v1393
    %v1443 = vpop.f32.mrf.mxu0
    %v1444 = vadd.f32 0.0, %v1443
    %v1445 = vpop.f32.mrf.mxu0
    %v1446 = vpop.f32.mrf.mxu0
    %v1447 = vadd.f32 0.0, %v1446
    %v1448 = vpop.f32.mrf.mxu0
    %1449 = vmatprep.mubr.bf16.mxu0 0
    %1450 = vmatmul.mubr.bf16.gmra.mxu0 %v1396
    %v1451 = vpop.f32.mrf.mxu0
    %v1452 = vadd.f32 0.0, %v1451
    %v1453 = vpop.f32.mrf.mxu0
    %v1454 = vpop.f32.mrf.mxu0
    %v1455 = vadd.f32 0.0, %v1454
    %v1456 = vpop.f32.mrf.mxu0
    %1457 = vmatprep.mubr.bf16.mxu0 0
    %1458 = vmatmul.mubr.bf16.gmra.mxu0 %v1399
    %v1459 = vpop.f32.mrf.mxu0
    %v1460 = vadd.f32 0.0, %v1459
    %v1461 = vpop.f32.mrf.mxu0
    %v1462 = vpop.f32.mrf.mxu0
    %v1463 = vadd.f32 0.0, %v1462
    %v1464 = vpop.f32.mrf.mxu0
    %1465 = vdwg.mxu0
    %v1466 = vadd.f32 %v1264, %v1436
    %v1467 = vadd.f32 %v1265, %v1439
    %v1468 = vadd.f32 %v1266, %v1444
    %v1469 = vadd.f32 %v1267, %v1447
    %v1470 = vadd.f32 %v1268, %v1452
    %v1471 = vadd.f32 %v1269, %v1455
    %v1472 = vadd.f32 %v1270, %v1460
    %v1473 = vadd.f32 %v1271, %v1463
    %s1474 = scalar_lea.vmem %s0, 224
    %v1475 = vld [vmem:[%s1474] sm:$0xf]
    %v1476 = vld [vmem:[%s1474 + $0x4] sm:$0xf]
    %v1477 = vld [vmem:[%s1474 + $0x8] sm:$0xf]
    %v1478 = vld [vmem:[%s1474 + $0xc] sm:$0xf]
    %v1479 = vld [vmem:[%s1474 + $0x10] sm:$0xf]
    %v1480 = vld [vmem:[%s1474 + $0x14] sm:$0xf]
    %v1481 = vld [vmem:[%s1474 + $0x18] sm:$0xf]
    %v1482 = vld [vmem:[%s1474 + $0x1c] sm:$0xf]
    %v1491 = vunpack.c.l.b16 %v1475
    %v1492 = vunpack.c.l.b16 %v1476
    %v1493 = vunpack.c.l.b16 %v1477
    %v1494 = vunpack.c.l.b16 %v1478
    %v1495 = vunpack.c.l.b16 %v1479
    %v1496 = vunpack.c.l.b16 %v1480
    %v1497 = vunpack.c.l.b16 %v1481
    %v1498 = vunpack.c.l.b16 %v1482
    %v1499 = vpack.c.b16 %v1492, %v1491
    %v1500 = vpack.c.b16 %v1494, %v1493
    %v1501 = vpack.c.b16 %v1496, %v1495
    %v1502 = vpack.c.b16 %v1498, %v1497
    %1507 = vmatprep.subr.bf16.mxu0 0
    %1508 = vmatpush1.bf16.msra.mxu0 0
    %1509 = vmatprep.subr.bf16.mxu0 0
    %1510 = vmatpush1.bf16.msra.mxu0 0
    %1511 = vmatprep.subr.bf16.mxu0 0
    %1512 = vmatpush1.bf16.msra.mxu0 0
    %1513 = vmatprep.subr.bf16.mxu0 0
    %1514 = vmatpush1.bf16.msra.mxu0 0
    %1515 = vmatprep.subr.bf16.mxu0 0
    %1516 = vmatpush1.bf16.msra.mxu0 %v1502
    %1517 = vmatprep.subr.bf16.mxu0 0
    %1518 = vmatpush1.bf16.msra.mxu0 %v1501
    %1519 = vmatprep.subr.bf16.mxu0 0
    %1520 = vmatpush1.bf16.msra.mxu0 %v1500
    %1521 = vmatprep.subr.bf16.mxu0 0
    %1522 = vmatpush1.bf16.msra.mxu0 %v1499
    %1523 = vmatprep.subr.bf16.mxu0 0
    %1524 = vmatpush2.bf16.msra.mxu0 0
    %1525 = vmatprep.subr.bf16.mxu0 0
    %1526 = vmatpush2.bf16.msra.mxu0 0
    %1527 = vmatprep.subr.bf16.mxu0 0
    %1528 = vmatpush2.bf16.msra.mxu0 0
    %1529 = vmatprep.subr.bf16.mxu0 0
    %1530 = vmatpush2.bf16.msra.mxu0 0
    %1531 = vmatprep.subr.bf16.mxu0 0
    %1532 = vmatpush2.bf16.msra.mxu0 0
    %1533 = vmatprep.subr.bf16.mxu0 0
    %1534 = vmatpush2.bf16.msra.mxu0 0
    %1535 = vmatprep.subr.bf16.mxu0 0
    %1536 = vmatpush2.bf16.msra.mxu0 0
    %1537 = vmatprep.subr.bf16.mxu0 0
    %1538 = vmatpush2.bf16.msra.mxu0 0
    %1539 = vmatprep.mubr.bf16.mxu0 0
    %1540 = vmatmul.mubr.bf16.gmra.mxu0 %v104
    %v1541 = vpop.f32.mrf.mxu0
    %v1542 = vadd.f32 %v51, %v1541
    %v1543 = vpop.f32.mrf.mxu0
    %v1544 = vpop.f32.mrf.mxu0
    %v1545 = vadd.f32 %v56, %v1544
    %v1546 = vpop.f32.mrf.mxu0
    %1547 = vmatprep.mubr.bf16.mxu0 0
    %1548 = vmatmul.mubr.bf16.gmra.mxu0 %v107
    %v1549 = vpop.f32.mrf.mxu0
    %v1550 = vadd.f32 %v61, %v1549
    %v1551 = vpop.f32.mrf.mxu0
    %v1552 = vpop.f32.mrf.mxu0
    %v1553 = vadd.f32 %v66, %v1552
    %v1554 = vpop.f32.mrf.mxu0
    %1555 = vdwg.mxu0
    %v1556 = vmax.f32 %v1542, 0.0
    %v1557 = vmax.f32 %v1545, 0.0
    %v1558 = vmax.f32 %v1550, 0.0
    %v1559 = vmax.f32 %v1553, 0.0
    %v1560 = vpack.c.bf16 %v1557, %v1556
    %v1561 = vpack.c.bf16 %v1559, %v1558
    %s1562 = scalar_lea.vmem %s3, 224
    %v1563 = vld [vmem:[%s1562] sm:$0xf]
    %v1564 = vld [vmem:[%s1562 + $0x4] sm:$0xf]
    %v1565 = vld [vmem:[%s1562 + $0x8] sm:$0xf]
    %v1566 = vld [vmem:[%s1562 + $0xc] sm:$0xf]
    %v1567 = vld [vmem:[%s1562 + $0x10] sm:$0xf]
    %v1568 = vld [vmem:[%s1562 + $0x14] sm:$0xf]
    %v1569 = vld [vmem:[%s1562 + $0x18] sm:$0xf]
    %v1570 = vld [vmem:[%s1562 + $0x1c] sm:$0xf]
    %v1579 = vunpack.c.l.b16 %v1563
    %v1580 = vunpack.c.l.b16 %v1564
    %v1581 = vunpack.c.l.b16 %v1565
    %v1582 = vunpack.c.l.b16 %v1566
    %v1583 = vunpack.c.l.b16 %v1567
    %v1584 = vunpack.c.l.b16 %v1568
    %v1585 = vunpack.c.l.b16 %v1569
    %v1586 = vunpack.c.l.b16 %v1570
    %v1587 = vpack.c.b16 %v1580, %v1579
    %v1588 = vpack.c.b16 %v1582, %v1581
    %v1589 = vpack.c.b16 %v1584, %v1583
    %v1590 = vpack.c.b16 %v1586, %v1585
    %v1592 = vsel %vm289, %v1587, 0
    %v1595 = vsel %vm289, %v1588, 0
    %v1598 = vsel %vm289, %v1589, 0
    %v1601 = vsel %vm289, %v1590, 0
    %1603 = vmatprep.subr.bf16.mxu0 0
    %1604 = vmatpush1.bf16.msra.mxu0 0
    %1605 = vmatprep.subr.bf16.mxu0 0
    %1606 = vmatpush1.bf16.msra.mxu0 0
    %1607 = vmatprep.subr.bf16.mxu0 0
    %1608 = vmatpush1.bf16.msra.mxu0 0
    %1609 = vmatprep.subr.bf16.mxu0 0
    %1610 = vmatpush1.bf16.msra.mxu0 0
    %1611 = vmatprep.subr.bf16.mxu0 0
    %1612 = vmatpush1.bf16.msra.mxu0 0
    %1613 = vmatprep.subr.bf16.mxu0 0
    %1614 = vmatpush1.bf16.msra.mxu0 0
    %1615 = vmatprep.subr.bf16.mxu0 0
    %1616 = vmatpush1.bf16.msra.mxu0 %v1561
    %1617 = vmatprep.subr.bf16.mxu0 0
    %1618 = vmatpush1.bf16.msra.mxu0 %v1560
    %1619 = vmatprep.subr.bf16.mxu0 0
    %1620 = vmatpush2.bf16.msra.mxu0 0
    %1621 = vmatprep.subr.bf16.mxu0 0
    %1622 = vmatpush2.bf16.msra.mxu0 0
    %1623 = vmatprep.subr.bf16.mxu0 0
    %1624 = vmatpush2.bf16.msra.mxu0 0
    %1625 = vmatprep.subr.bf16.mxu0 0
    %1626 = vmatpush2.bf16.msra.mxu0 0
    %1627 = vmatprep.subr.bf16.mxu0 0
    %1628 = vmatpush2.bf16.msra.mxu0 0
    %1629 = vmatprep.subr.bf16.mxu0 0
    %1630 = vmatpush2.bf16.msra.mxu0 0
    %1631 = vmatprep.subr.bf16.mxu0 0
    %1632 = vmatpush2.bf16.msra.mxu0 0
    %1633 = vmatprep.subr.bf16.mxu0 0
    %1634 = vmatpush2.bf16.msra.mxu0 0
    %1635 = vmatprep.mubr.bf16.mxu0 0
    %1636 = vmatmul.mubr.bf16.gmra.mxu0 %v1592
    %v1637 = vpop.f32.mrf.mxu0
    %v1638 = vadd.f32 0.0, %v1637
    %v1639 = vpop.f32.mrf.mxu0
    %v1640 = vpop.f32.mrf.mxu0
    %v1641 = vadd.f32 0.0, %v1640
    %v1642 = vpop.f32.mrf.mxu0
    %1643 = vmatprep.mubr.bf16.mxu0 0
    %1644 = vmatmul.mubr.bf16.gmra.mxu0 %v1595
    %v1645 = vpop.f32.mrf.mxu0
    %v1646 = vadd.f32 0.0, %v1645
    %v1647 = vpop.f32.mrf.mxu0
    %v1648 = vpop.f32.mrf.mxu0
    %v1649 = vadd.f32 0.0, %v1648
    %v1650 = vpop.f32.mrf.mxu0
    %1651 = vmatprep.mubr.bf16.mxu0 0
    %1652 = vmatmul.mubr.bf16.gmra.mxu0 %v1598
    %v1653 = vpop.f32.mrf.mxu0
    %v1654 = vadd.f32 0.0, %v1653
    %v1655 = vpop.f32.mrf.mxu0
    %v1656 = vpop.f32.mrf.mxu0
    %v1657 = vadd.f32 0.0, %v1656
    %v1658 = vpop.f32.mrf.mxu0
    %1659 = vmatprep.mubr.bf16.mxu0 0
    %1660 = vmatmul.mubr.bf16.gmra.mxu0 %v1601
    %v1661 = vpop.f32.mrf.mxu0
    %v1662 = vadd.f32 0.0, %v1661
    %v1663 = vpop.f32.mrf.mxu0
    %v1664 = vpop.f32.mrf.mxu0
    %v1665 = vadd.f32 0.0, %v1664
    %v1666 = vpop.f32.mrf.mxu0
    %1667 = vdwg.mxu0
    %v1668 = vadd.f32 %v1466, %v1638
    %v1669 = vadd.f32 %v1467, %v1641
    %v1670 = vadd.f32 %v1468, %v1646
    %v1671 = vadd.f32 %v1469, %v1649
    %v1672 = vadd.f32 %v1470, %v1654
    %v1673 = vadd.f32 %v1471, %v1657
    %v1674 = vadd.f32 %v1472, %v1662
    %v1675 = vadd.f32 %v1473, %v1665
    %s1676 = scalar_lea.vmem %s0, 256
    %v1677 = vld [vmem:[%s1676] sm:$0xf]
    %v1678 = vld [vmem:[%s1676 + $0x4] sm:$0xf]
    %v1679 = vld [vmem:[%s1676 + $0x8] sm:$0xf]
    %v1680 = vld [vmem:[%s1676 + $0xc] sm:$0xf]
    %v1681 = vld [vmem:[%s1676 + $0x10] sm:$0xf]
    %v1682 = vld [vmem:[%s1676 + $0x14] sm:$0xf]
    %v1683 = vld [vmem:[%s1676 + $0x18] sm:$0xf]
    %v1684 = vld [vmem:[%s1676 + $0x1c] sm:$0xf]
    %v1693 = vunpack.c.l.b16 %v1677
    %v1694 = vunpack.c.l.b16 %v1678
    %v1695 = vunpack.c.l.b16 %v1679
    %v1696 = vunpack.c.l.b16 %v1680
    %v1697 = vunpack.c.l.b16 %v1681
    %v1698 = vunpack.c.l.b16 %v1682
    %v1699 = vunpack.c.l.b16 %v1683
    %v1700 = vunpack.c.l.b16 %v1684
    %v1701 = vpack.c.b16 %v1694, %v1693
    %v1702 = vpack.c.b16 %v1696, %v1695
    %v1703 = vpack.c.b16 %v1698, %v1697
    %v1704 = vpack.c.b16 %v1700, %v1699
    %1709 = vmatprep.subr.bf16.mxu0 0
    %1710 = vmatpush1.bf16.msra.mxu0 0
    %1711 = vmatprep.subr.bf16.mxu0 0
    %1712 = vmatpush1.bf16.msra.mxu0 0
    %1713 = vmatprep.subr.bf16.mxu0 0
    %1714 = vmatpush1.bf16.msra.mxu0 0
    %1715 = vmatprep.subr.bf16.mxu0 0
    %1716 = vmatpush1.bf16.msra.mxu0 0
    %1717 = vmatprep.subr.bf16.mxu0 0
    %1718 = vmatpush1.bf16.msra.mxu0 %v1704
    %1719 = vmatprep.subr.bf16.mxu0 0
    %1720 = vmatpush1.bf16.msra.mxu0 %v1703
    %1721 = vmatprep.subr.bf16.mxu0 0
    %1722 = vmatpush1.bf16.msra.mxu0 %v1702
    %1723 = vmatprep.subr.bf16.mxu0 0
    %1724 = vmatpush1.bf16.msra.mxu0 %v1701
    %1725 = vmatprep.subr.bf16.mxu0 0
    %1726 = vmatpush2.bf16.msra.mxu0 0
    %1727 = vmatprep.subr.bf16.mxu0 0
    %1728 = vmatpush2.bf16.msra.mxu0 0
    %1729 = vmatprep.subr.bf16.mxu0 0
    %1730 = vmatpush2.bf16.msra.mxu0 0
    %1731 = vmatprep.subr.bf16.mxu0 0
    %1732 = vmatpush2.bf16.msra.mxu0 0
    %1733 = vmatprep.subr.bf16.mxu0 0
    %1734 = vmatpush2.bf16.msra.mxu0 0
    %1735 = vmatprep.subr.bf16.mxu0 0
    %1736 = vmatpush2.bf16.msra.mxu0 0
    %1737 = vmatprep.subr.bf16.mxu0 0
    %1738 = vmatpush2.bf16.msra.mxu0 0
    %1739 = vmatprep.subr.bf16.mxu0 0
    %1740 = vmatpush2.bf16.msra.mxu0 0
    %1741 = vmatprep.mubr.bf16.mxu0 0
    %1742 = vmatmul.mubr.bf16.gmra.mxu0 %v104
    %v1743 = vpop.f32.mrf.mxu0
    %v1744 = vadd.f32 %v51, %v1743
    %v1745 = vpop.f32.mrf.mxu0
    %v1746 = vpop.f32.mrf.mxu0
    %v1747 = vadd.f32 %v56, %v1746
    %v1748 = vpop.f32.mrf.mxu0
    %1749 = vmatprep.mubr.bf16.mxu0 0
    %1750 = vmatmul.mubr.bf16.gmra.mxu0 %v107
    %v1751 = vpop.f32.mrf.mxu0
    %v1752 = vadd.f32 %v61, %v1751
    %v1753 = vpop.f32.mrf.mxu0
    %v1754 = vpop.f32.mrf.mxu0
    %v1755 = vadd.f32 %v66, %v1754
    %v1756 = vpop.f32.mrf.mxu0
    %1757 = vdwg.mxu0
    %v1758 = vmax.f32 %v1744, 0.0
    %v1759 = vmax.f32 %v1747, 0.0
    %v1760 = vmax.f32 %v1752, 0.0
    %v1761 = vmax.f32 %v1755, 0.0
    %v1762 = vpack.c.bf16 %v1759, %v1758
    %v1763 = vpack.c.bf16 %v1761, %v1760
    %s1764 = scalar_lea.vmem %s3, 256
    %v1765 = vld [vmem:[%s1764] sm:$0xf]
    %v1766 = vld [vmem:[%s1764 + $0x4] sm:$0xf]
    %v1767 = vld [vmem:[%s1764 + $0x8] sm:$0xf]
    %v1768 = vld [vmem:[%s1764 + $0xc] sm:$0xf]
    %v1769 = vld [vmem:[%s1764 + $0x10] sm:$0xf]
    %v1770 = vld [vmem:[%s1764 + $0x14] sm:$0xf]
    %v1771 = vld [vmem:[%s1764 + $0x18] sm:$0xf]
    %v1772 = vld [vmem:[%s1764 + $0x1c] sm:$0xf]
    %v1781 = vunpack.c.l.b16 %v1765
    %v1782 = vunpack.c.l.b16 %v1766
    %v1783 = vunpack.c.l.b16 %v1767
    %v1784 = vunpack.c.l.b16 %v1768
    %v1785 = vunpack.c.l.b16 %v1769
    %v1786 = vunpack.c.l.b16 %v1770
    %v1787 = vunpack.c.l.b16 %v1771
    %v1788 = vunpack.c.l.b16 %v1772
    %v1789 = vpack.c.b16 %v1782, %v1781
    %v1790 = vpack.c.b16 %v1784, %v1783
    %v1791 = vpack.c.b16 %v1786, %v1785
    %v1792 = vpack.c.b16 %v1788, %v1787
    %v1794 = vsel %vm289, %v1789, 0
    %v1797 = vsel %vm289, %v1790, 0
    %v1800 = vsel %vm289, %v1791, 0
    %v1803 = vsel %vm289, %v1792, 0
    %1805 = vmatprep.subr.bf16.mxu0 0
    %1806 = vmatpush1.bf16.msra.mxu0 0
    %1807 = vmatprep.subr.bf16.mxu0 0
    %1808 = vmatpush1.bf16.msra.mxu0 0
    %1809 = vmatprep.subr.bf16.mxu0 0
    %1810 = vmatpush1.bf16.msra.mxu0 0
    %1811 = vmatprep.subr.bf16.mxu0 0
    %1812 = vmatpush1.bf16.msra.mxu0 0
    %1813 = vmatprep.subr.bf16.mxu0 0
    %1814 = vmatpush1.bf16.msra.mxu0 0
    %1815 = vmatprep.subr.bf16.mxu0 0
    %1816 = vmatpush1.bf16.msra.mxu0 0
    %1817 = vmatprep.subr.bf16.mxu0 0
    %1818 = vmatpush1.bf16.msra.mxu0 %v1763
    %1819 = vmatprep.subr.bf16.mxu0 0
    %1820 = vmatpush1.bf16.msra.mxu0 %v1762
    %1821 = vmatprep.subr.bf16.mxu0 0
    %1822 = vmatpush2.bf16.msra.mxu0 0
    %1823 = vmatprep.subr.bf16.mxu0 0
    %1824 = vmatpush2.bf16.msra.mxu0 0
    %1825 = vmatprep.subr.bf16.mxu0 0
    %1826 = vmatpush2.bf16.msra.mxu0 0
    %1827 = vmatprep.subr.bf16.mxu0 0
    %1828 = vmatpush2.bf16.msra.mxu0 0
    %1829 = vmatprep.subr.bf16.mxu0 0
    %1830 = vmatpush2.bf16.msra.mxu0 0
    %1831 = vmatprep.subr.bf16.mxu0 0
    %1832 = vmatpush2.bf16.msra.mxu0 0
    %1833 = vmatprep.subr.bf16.mxu0 0
    %1834 = vmatpush2.bf16.msra.mxu0 0
    %1835 = vmatprep.subr.bf16.mxu0 0
    %1836 = vmatpush2.bf16.msra.mxu0 0
    %1837 = vmatprep.mubr.bf16.mxu0 0
    %1838 = vmatmul.mubr.bf16.gmra.mxu0 %v1794
    %v1839 = vpop.f32.mrf.mxu0
    %v1840 = vadd.f32 0.0, %v1839
    %v1841 = vpop.f32.mrf.mxu0
    %v1842 = vpop.f32.mrf.mxu0
    %v1843 = vadd.f32 0.0, %v1842
    %v1844 = vpop.f32.mrf.mxu0
    %1845 = vmatprep.mubr.bf16.mxu0 0
    %1846 = vmatmul.mubr.bf16.gmra.mxu0 %v1797
    %v1847 = vpop.f32.mrf.mxu0
    %v1848 = vadd.f32 0.0, %v1847
    %v1849 = vpop.f32.mrf.mxu0
    %v1850 = vpop.f32.mrf.mxu0
    %v1851 = vadd.f32 0.0, %v1850
    %v1852 = vpop.f32.mrf.mxu0
    %1853 = vmatprep.mubr.bf16.mxu0 0
    %1854 = vmatmul.mubr.bf16.gmra.mxu0 %v1800
    %v1855 = vpop.f32.mrf.mxu0
    %v1856 = vadd.f32 0.0, %v1855
    %v1857 = vpop.f32.mrf.mxu0
    %v1858 = vpop.f32.mrf.mxu0
    %v1859 = vadd.f32 0.0, %v1858
    %v1860 = vpop.f32.mrf.mxu0
    %1861 = vmatprep.mubr.bf16.mxu0 0
    %1862 = vmatmul.mubr.bf16.gmra.mxu0 %v1803
    %v1863 = vpop.f32.mrf.mxu0
    %v1864 = vadd.f32 0.0, %v1863
    %v1865 = vpop.f32.mrf.mxu0
    %v1866 = vpop.f32.mrf.mxu0
    %v1867 = vadd.f32 0.0, %v1866
    %v1868 = vpop.f32.mrf.mxu0
    %1869 = vdwg.mxu0
    %v1870 = vadd.f32 %v1668, %v1840
    %v1871 = vadd.f32 %v1669, %v1843
    %v1872 = vadd.f32 %v1670, %v1848
    %v1873 = vadd.f32 %v1671, %v1851
    %v1874 = vadd.f32 %v1672, %v1856
    %v1875 = vadd.f32 %v1673, %v1859
    %v1876 = vadd.f32 %v1674, %v1864
    %v1877 = vadd.f32 %v1675, %v1867
    %v1878 = vld [vmem:[%s4] sm:$0xff]
    %v1879 = vld [vmem:[%s4 + $0x8] sm:$0xff]
    %v1880 = vld [vmem:[%s4 + $0x10] sm:$0xff]
    %v1881 = vld [vmem:[%s4 + $0x18] sm:$0xff]
    %v1882 = vld [vmem:[%s4 + $0x20] sm:$0xff]
    %v1883 = vld [vmem:[%s4 + $0x28] sm:$0xff]
    %v1884 = vld [vmem:[%s4 + $0x30] sm:$0xff]
    %v1885 = vld [vmem:[%s4 + $0x38] sm:$0xff]
    %1887 = vset.pattern.permute.xlu0 0
    %1888 = vperm.xlu0 %1887, %v1878
    %v1889 = vpop.permute.xlu0 %1888
    %1892 = vset.pattern.permute.xlu0 0
    %1893 = vperm.xlu0 %1892, %v1879
    %v1894 = vpop.permute.xlu0 %1893
    %1897 = vset.pattern.permute.xlu0 0
    %1898 = vperm.xlu0 %1897, %v1880
    %v1899 = vpop.permute.xlu0 %1898
    %1902 = vset.pattern.permute.xlu0 0
    %1903 = vperm.xlu0 %1902, %v1881
    %v1904 = vpop.permute.xlu0 %1903
    %1907 = vset.pattern.permute.xlu0 0
    %1908 = vperm.xlu0 %1907, %v1882
    %v1909 = vpop.permute.xlu0 %1908
    %1912 = vset.pattern.permute.xlu0 0
    %1913 = vperm.xlu0 %1912, %v1883
    %v1914 = vpop.permute.xlu0 %1913
    %1917 = vset.pattern.permute.xlu0 0
    %1918 = vperm.xlu0 %1917, %v1884
    %v1919 = vpop.permute.xlu0 %1918
    %1922 = vset.pattern.permute.xlu0 0
    %1923 = vperm.xlu0 %1922, %v1885
    %v1924 = vpop.permute.xlu0 %1923
    %v1926 = vadd.f32 %v1870, %v1889
    %v1927 = vadd.f32 %v1871, %v1894
    %v1928 = vadd.f32 %v1872, %v1899
    %v1929 = vadd.f32 %v1873, %v1904
    %v1930 = vadd.f32 %v1874, %v1909
    %v1931 = vadd.f32 %v1875, %v1914
    %v1932 = vadd.f32 %v1876, %v1919
    %v1933 = vadd.f32 %v1877, %v1924
    %v1934 = vmax.f32 %v1926, 0.0
    %v1935 = vmax.f32 %v1927, 0.0
    %v1936 = vmax.f32 %v1928, 0.0
    %v1937 = vmax.f32 %v1929, 0.0
    %v1938 = vmax.f32 %v1930, 0.0
    %v1939 = vmax.f32 %v1931, 0.0
    %v1940 = vmax.f32 %v1932, 0.0
    %v1941 = vmax.f32 %v1933, 0.0
    %v1942 = vld [vmem:[%s5] sm:$0xff]
    %v1943 = vld [vmem:[%s5 + $0x8] sm:$0xff]
    %v1944 = vld [vmem:[%s5 + $0x10] sm:$0xff]
    %v1945 = vld [vmem:[%s5 + $0x18] sm:$0xff]
    %v1946 = vld [vmem:[%s5 + $0x20] sm:$0xff]
    %v1947 = vld [vmem:[%s5 + $0x28] sm:$0xff]
    %v1948 = vld [vmem:[%s5 + $0x30] sm:$0xff]
    %v1949 = vld [vmem:[%s5 + $0x38] sm:$0xff]
    %v1950 = vmul.f32 %v1934, %v1942
    %v1951 = vmul.f32 %v1935, %v1943
    %v1952 = vmul.f32 %v1936, %v1944
    %v1953 = vmul.f32 %v1937, %v1945
    %v1954 = vmul.f32 %v1938, %v1946
    %v1955 = vmul.f32 %v1939, %v1947
    %v1956 = vmul.f32 %v1940, %v1948
    %v1957 = vmul.f32 %v1941, %v1949
    %v1958 = vld [vmem:[%s6] sm:$0xff]
    %v1959 = vld [vmem:[%s6 + $0x8] sm:$0xff]
    %v1960 = vld [vmem:[%s6 + $0x10] sm:$0x3]
    %vm1961 = vcmask 146432
    %v1963 = vsel %vm1961, %v1950, 0
    %v1966 = vsel %vm1961, %v1951, 0
    %v1969 = vsel %vm1961, %v1952, 0
    %v1972 = vsel %vm1961, %v1953, 0
    %v1975 = vsel %vm1961, %v1954, 0
    %v1978 = vsel %vm1961, %v1955, 0
    %v1981 = vsel %vm1961, %v1956, 0
    %v1984 = vsel %vm1961, %v1957, 0
    %vm1986 = vcmask 1041408
    %v1988 = vsel %vm1986, %v1960, 0
    %1990 = vmatprep.subr.mxu0 0.0
    %1991 = vmatpush1.msra.mxu0 0.0
    %1992 = vmatprep.subr.mxu0 0.0
    %1993 = vmatpush1.msra.mxu0 0.0
    %1994 = vmatprep.subr.mxu0 0.0
    %1995 = vmatpush1.msra.mxu0 0.0
    %1996 = vmatprep.subr.mxu0 0.0
    %1997 = vmatpush1.msra.mxu0 0.0
    %1998 = vmatprep.subr.mxu0 0.0
    %1999 = vmatpush1.msra.mxu0 0.0
    %2000 = vmatprep.subr.mxu0 0.0
    %2001 = vmatpush1.msra.mxu0 0.0
    %2002 = vmatprep.subr.mxu0 0.0
    %2003 = vmatpush1.msra.mxu0 0.0
    %2004 = vmatprep.subr.mxu0 0.0
    %2005 = vmatpush1.msra.mxu0 0.0
    %2006 = vmatprep.subr.mxu0 0.0
    %2007 = vmatpush1.msra.mxu0 0.0
    %2008 = vmatprep.subr.mxu0 0.0
    %2009 = vmatpush1.msra.mxu0 0.0
    %2010 = vmatprep.subr.mxu0 0.0
    %2011 = vmatpush1.msra.mxu0 0.0
    %2012 = vmatprep.subr.mxu0 0.0
    %2013 = vmatpush1.msra.mxu0 0.0
    %2014 = vmatprep.subr.mxu0 0.0
    %2015 = vmatpush1.msra.mxu0 0.0
    %2016 = vmatprep.subr.mxu0 0.0
    %2017 = vmatpush1.msra.mxu0 %v1988
    %2018 = vmatprep.subr.mxu0 0.0
    %2019 = vmatpush1.msra.mxu0 %v1959
    %2020 = vmatprep.subr.mxu0 0.0
    %2021 = vmatpush1.msra.mxu0 %v1958
    %2022 = vmatprep.subr.mxu0 0.0
    %2023 = vmatpush2.msra.mxu0 0.0
    %2024 = vmatprep.subr.mxu0 0.0
    %2025 = vmatpush2.msra.mxu0 0.0
    %2026 = vmatprep.subr.mxu0 0.0
    %2027 = vmatpush2.msra.mxu0 0.0
    %2028 = vmatprep.subr.mxu0 0.0
    %2029 = vmatpush2.msra.mxu0 0.0
    %2030 = vmatprep.subr.mxu0 0.0
    %2031 = vmatpush2.msra.mxu0 0.0
    %2032 = vmatprep.subr.mxu0 0.0
    %2033 = vmatpush2.msra.mxu0 0.0
    %2034 = vmatprep.subr.mxu0 0.0
    %2035 = vmatpush2.msra.mxu0 0.0
    %2036 = vmatprep.subr.mxu0 0.0
    %2037 = vmatpush2.msra.mxu0 0.0
    %2038 = vmatprep.subr.mxu0 0.0
    %2039 = vmatpush2.msra.mxu0 0.0
    %2040 = vmatprep.subr.mxu0 0.0
    %2041 = vmatpush2.msra.mxu0 0.0
    %2042 = vmatprep.subr.mxu0 0.0
    %2043 = vmatpush2.msra.mxu0 0.0
    %2044 = vmatprep.subr.mxu0 0.0
    %2045 = vmatpush2.msra.mxu0 0.0
    %2046 = vmatprep.subr.mxu0 0.0
    %2047 = vmatpush2.msra.mxu0 0.0
    %2048 = vmatprep.subr.mxu0 0.0
    %2049 = vmatpush2.msra.mxu0 0.0
    %2050 = vmatprep.subr.mxu0 0.0
    %2051 = vmatpush2.msra.mxu0 0.0
    %2052 = vmatprep.subr.mxu0 0.0
    %2053 = vmatpush2.msra.mxu0 0.0
    %2054 = vmatprep.mubr.f32.mxu0 0.0
    %2055 = vmatmul.mubr.f32.gmra.mxu0 %v1963
    %v2056 = vpop.f32.mrf.mxu0
    %v2057 = vadd.f32 0.0, %v2056
    %v2058 = vpop.f32.mrf.mxu0
    %2059 = vmatprep.mubr.f32.mxu0 0.0
    %2060 = vmatmul.mubr.f32.gmra.mxu0 %v1966
    %v2061 = vpop.f32.mrf.mxu0
    %v2062 = vadd.f32 0.0, %v2061
    %v2063 = vpop.f32.mrf.mxu0
    %2064 = vmatprep.mubr.f32.mxu0 0.0
    %2065 = vmatmul.mubr.f32.gmra.mxu0 %v1969
    %v2066 = vpop.f32.mrf.mxu0
    %v2067 = vadd.f32 0.0, %v2066
    %v2068 = vpop.f32.mrf.mxu0
    %2069 = vmatprep.mubr.f32.mxu0 0.0
    %2070 = vmatmul.mubr.f32.gmra.mxu0 %v1972
    %v2071 = vpop.f32.mrf.mxu0
    %v2072 = vadd.f32 0.0, %v2071
    %v2073 = vpop.f32.mrf.mxu0
    %2074 = vmatprep.mubr.f32.mxu0 0.0
    %2075 = vmatmul.mubr.f32.gmra.mxu0 %v1975
    %v2076 = vpop.f32.mrf.mxu0
    %v2077 = vadd.f32 0.0, %v2076
    %v2078 = vpop.f32.mrf.mxu0
    %2079 = vmatprep.mubr.f32.mxu0 0.0
    %2080 = vmatmul.mubr.f32.gmra.mxu0 %v1978
    %v2081 = vpop.f32.mrf.mxu0
    %v2082 = vadd.f32 0.0, %v2081
    %v2083 = vpop.f32.mrf.mxu0
    %2084 = vmatprep.mubr.f32.mxu0 0.0
    %2085 = vmatmul.mubr.f32.gmra.mxu0 %v1981
    %v2086 = vpop.f32.mrf.mxu0
    %v2087 = vadd.f32 0.0, %v2086
    %v2088 = vpop.f32.mrf.mxu0
    %2089 = vmatprep.mubr.f32.mxu0 0.0
    %2090 = vmatmul.mubr.f32.gmra.mxu0 %v1984
    %v2091 = vpop.f32.mrf.mxu0
    %v2092 = vadd.f32 0.0, %v2091
    %v2093 = vpop.f32.mrf.mxu0
    %2094 = vdwg.mxu0
    %s2095 = sld [smem:[#allocation2]]
    %v2096 = vstv %s2095
    %v2098 = vsel %vm102, 1.0, 0
    %2100 = vmatprep.subr.mxu0 0.0
    %2101 = vmatpush1.msra.mxu0 0.0
    %2102 = vmatprep.subr.mxu0 0.0
    %2103 = vmatpush1.msra.mxu0 0.0
    %2104 = vmatprep.subr.mxu0 0.0
    %2105 = vmatpush1.msra.mxu0 0.0
    %2106 = vmatprep.subr.mxu0 0.0
    %2107 = vmatpush1.msra.mxu0 0.0
    %2108 = vmatprep.subr.mxu0 0.0
    %2109 = vmatpush1.msra.mxu0 0.0
    %2110 = vmatprep.subr.mxu0 0.0
    %2111 = vmatpush1.msra.mxu0 0.0
    %2112 = vmatprep.subr.mxu0 0.0
    %2113 = vmatpush1.msra.mxu0 0.0
    %2114 = vmatprep.subr.mxu0 0.0
    %2115 = vmatpush1.msra.mxu0 0.0
    %2116 = vmatprep.subr.mxu0 0.0
    %2117 = vmatpush1.msra.mxu0 %v2092
    %2118 = vmatprep.subr.mxu0 0.0
    %2119 = vmatpush1.msra.mxu0 %v2087
    %2120 = vmatprep.subr.mxu0 0.0
    %2121 = vmatpush1.msra.mxu0 %v2082
    %2122 = vmatprep.subr.mxu0 0.0
    %2123 = vmatpush1.msra.mxu0 %v2077
    %2124 = vmatprep.subr.mxu0 0.0
    %2125 = vmatpush1.msra.mxu0 %v2072
    %2126 = vmatprep.subr.mxu0 0.0
    %2127 = vmatpush1.msra.mxu0 %v2067
    %2128 = vmatprep.subr.mxu0 0.0
    %2129 = vmatpush1.msra.mxu0 %v2062
    %2130 = vmatprep.subr.mxu0 0.0
    %2131 = vmatpush1.msra.mxu0 %v2057
    %2132 = vmatprep.subr.mxu0 0.0
    %2133 = vmatpush2.msra.mxu0 0.0
    %2134 = vmatprep.subr.mxu0 0.0
    %2135 = vmatpush2.msra.mxu0 0.0
    %2136 = vmatprep.subr.mxu0 0.0
    %2137 = vmatpush2.msra.mxu0 0.0
    %2138 = vmatprep.subr.mxu0 0.0
    %2139 = vmatpush2.msra.mxu0 0.0
    %2140 = vmatprep.subr.mxu0 0.0
    %2141 = vmatpush2.msra.mxu0 0.0
    %2142 = vmatprep.subr.mxu0 0.0
    %2143 = vmatpush2.msra.mxu0 0.0
    %2144 = vmatprep.subr.mxu0 0.0
    %2145 = vmatpush2.msra.mxu0 0.0
    %2146 = vmatprep.subr.mxu0 0.0
    %2147 = vmatpush2.msra.mxu0 0.0
    %2148 = vmatprep.subr.mxu0 0.0
    %2149 = vmatpush2.msra.mxu0 0.0
    %2150 = vmatprep.subr.mxu0 0.0
    %2151 = vmatpush2.msra.mxu0 0.0
    %2152 = vmatprep.subr.mxu0 0.0
    %2153 = vmatpush2.msra.mxu0 0.0
    %2154 = vmatprep.subr.mxu0 0.0
    %2155 = vmatpush2.msra.mxu0 0.0
    %2156 = vmatprep.subr.mxu0 0.0
    %2157 = vmatpush2.msra.mxu0 0.0
    %2158 = vmatprep.subr.mxu0 0.0
    %2159 = vmatpush2.msra.mxu0 0.0
    %2160 = vmatprep.subr.mxu0 0.0
    %2161 = vmatpush2.msra.mxu0 0.0
    %2162 = vmatprep.subr.mxu0 0.0
    %2163 = vmatpush2.msra.mxu0 0.0
    %2164 = vmatprep.mubr.f32.mxu0 0.0
    %2165 = vmatmul.mubr.f32.gmra.mxu0 %v2098
    %v2166 = vpop.f32.mrf.mxu0
    %v2167 = vadd.f32 %v2096, %v2166
    %v2168 = vpop.f32.mrf.mxu0
    %2169 = vdwg.mxu0
    %vm2170 = vcmask 8192
    %2171 = vst.msk [vmem:[#allocation3] sm:$0x1] %vm2170, %v2167
    // Predicated region
    $region34: #{cnn_forward.1} parent=1 // pred_check
      _
    $region35: #{cnn_forward.1} parent=1 // pred_check_branch
      %2173 = sbr.rel (0) target = $region37
    $region36: #{cnn_forward.1} parent=1 // pred_region
      %s2175 = ssub.s32 16, 16
      %2176 = vsyncadd [#allocation4], %s2175
      %s2178 = sshll.u32 [#allocation3], 4
      %s2179 = int_to_ptr.vmem [resolvable:$true] %s2178
      %2181 = dma.vmem_to_hbm [thread:$0]  %s2179, 16, %s8, [#allocation4]
    $region37: #{cnn_forward.1} parent=1 // pred_fallthru
      _
    // Predicated region
    $region38: #{cnn_forward.1} parent=1 // pred_check
      _
    $region39: #{cnn_forward.1} parent=1 // pred_check_branch
      %2183 = sbr.rel (0) target = $region41
    $region40: #{cnn_forward.1} parent=1 // pred_region
      %2184 = dma.done [#allocation4], 16
    $region41: #{cnn_forward.1} parent=1 // pred_fallthru
      _
    %2185 = vsyncpa [#allocation4], 1

</llo_original>
